<compile_context>
chip_gen: v5e
topology: v5e:2x2
jax: 0.10.0
libtpu: 0.0.40
codegen_flags: <defaults>
</compile_context>

<pallas_src>
import numpy as np
import jax
import jax.numpy as jnp
from jax.experimental import pallas as pl
from jax.experimental.pallas import tpu as pltpu

# ---- configuration (matches the notebook globals / module __init__ args) ----
BATCH = 8
INPUT_DIM = 16
OUTPUT_DIM = 4
N_D = 28
N_A = 80
N_STEPS = 1
N_INDEPENDENT = 2
N_SHARED = 1            # kernel assumes exactly one shared GLU layer
GAMMA = 1.3
EPS = 1e-15
PRELU_A = 0.25
ND_NA = N_D + N_A       # 108 (real hidden width)
HID = 128               # lane-padded hidden width
GLU_W = 2 * HID         # 256 (value half lanes 0-127, gate half lanes 128-255)
OUT_W = 128             # lane-padded output width (lanes 0..3 logits, lane 4 m-loss)
SQRT_HALF = float(np.sqrt(0.5))
NEWTON_ITERS = 8        # monotone Newton from tau=-1; 7 suffices worst-case


def tabnet_kernel(x_ref, init_bn_ref, bn_off_ref, shared_fc_ref, fc_spec_ref,
                  att_fc_ref, final_fc_ref, out_ref):
    TB = x_ref.shape[0]

    # initial BatchNorm1d (folded to scale/offset; packed in init_bn rows 0/1)
    x = x_ref[...] * init_bn_ref[0:1, :] + init_bn_ref[1:2, :]      # (TB, INPUT_DIM)

    def glu_layer(h, w, off):
        # w is bf16 with the GBN scale pre-folded; off is the remaining GBN offset.
        y = jnp.dot(h.astype(jnp.bfloat16), w,
                    preferred_element_type=jnp.float32)             # (TB, 256)
        y = y + off
        # 128-aligned value/gate split (padded lanes carry exact zeros).
        return y[:, :HID] * jax.nn.sigmoid(y[:, HID:])              # (TB, 128)

    def feat_transformer(h, t):
        # t = transformer index: 0 = initial splitter, 1.. = per-step transformers
        bn_base = (N_SHARED + N_INDEPENDENT) * t
        spec_base = N_INDEPENDENT * t
        # shared GLU block: first=True, n_glu = n_shared = 1 (no residual / scale)
        h = glu_layer(h, shared_fc_ref[t], bn_off_ref[bn_base:bn_base + 1, :])
        # independent GLU block: first=False, n_glu = n_independent
        for j in range(N_INDEPENDENT):
            g = glu_layer(h, fc_spec_ref[spec_base + j],
                          bn_off_ref[bn_base + 1 + j:bn_base + 2 + j, :])
            h = (h + g) * SQRT_HALF
        return h                                                     # (TB, 128)

    def entmax15(logits):
        # exact Entmax-1.5: p = clamp(z - tau, 0)^2 with z = (x - max)/2, sum p = 1.
        # f(tau) = sum((z-tau)_+^2) - 1 is convex & decreasing; starting Newton at
        # tau = -1 (where f >= 0) gives monotone, non-overshooting convergence.
        z = (logits - jnp.max(logits, axis=-1, keepdims=True)) * 0.5
        tau = jnp.full((TB, 1), -1.0, dtype=jnp.float32)
        for _ in range(NEWTON_ITERS):                                # fully unrolled
            zm = jnp.maximum(z - tau, 0.0)
            f = jnp.sum(zm * zm, axis=-1, keepdims=True) - 1.0
            g = jnp.sum(zm, axis=-1, keepdims=True)                  # = -f'/2 >= 1 while f>=0
            tau = jnp.clip(tau + f / (2.0 * g), -1.0, 0.0)           # clip = cheap safeguard
        return jnp.square(jnp.maximum(z - tau, 0.0))

    # constant one-hot lanes (trace-time constants)
    lane = jax.lax.broadcasted_iota(jnp.int32, (1, HID), 1)
    bias_lane = (lane == HID - 1).astype(jnp.float32)                # att bias lane
    olane = jax.lax.broadcasted_iota(jnp.int32, (1, OUT_W), 1)
    mloss_lane = (olane == OUTPUT_DIM).astype(jnp.float32)           # m-loss output lane

    # initial splitter; the [:, n_d:] head slice is folded into att_fc's zero rows.
    att = feat_transformer(x, 0)                                     # (TB, 128)
    prior = None
    res = None
    mloss_rows = None

    for step in range(N_STEPS):
        # AttentiveTransformer: fc (scale-folded, GBN offset in bias row 127)
        a = jnp.dot((att + bias_lane).astype(jnp.bfloat16), att_fc_ref[step],
                    preferred_element_type=jnp.float32)              # (TB, INPUT_DIM)
        if step > 0:                                                 # prior==1 on step 0
            a = a * prior
        M = entmax15(a)                                              # (TB, INPUT_DIM)

        per_row = jnp.sum(M * jnp.log(M + EPS), axis=1, keepdims=True)   # (TB, 1)
        mloss_rows = per_row if step == 0 else mloss_rows + per_row

        if step + 1 < N_STEPS:                                       # dead on last step
            prior = (GAMMA - M) if step == 0 else (GAMMA - M) * prior

        out = feat_transformer(M * x, 1 + step)                      # (TB, 128)
        # PReLU(a=0.25) over the full padded width: only lanes 0..n_d-1 reach the
        # output because final_fc has zero rows elsewhere; padded lanes stay 0.
        d = jnp.where(out > 0, out, PRELU_A * out)
        res = d if step == 0 else res + d
        if step + 1 < N_STEPS:
            att = out

    # final mapping (zero-padded to 128 lanes) + per-row m-loss in lane OUTPUT_DIM
    y = jnp.dot(res.astype(jnp.bfloat16), final_fc_ref[...],
                preferred_element_type=jnp.float32)                  # (TB, OUT_W)
    out_ref[...] = y + mloss_rows * mloss_lane


def tabnet_forward(x, params):
    B = x.shape[0]
    tile_b = B
    for cand in (256, 128, 64, 32, 16, 8):
        if B % cand == 0:
            tile_b = cand
            break
    grid = (B // tile_b,)

    init_bn, bn_off, shared_fc, fc_spec, att_fc, final_fc = params

    in_specs = [
        pl.BlockSpec((tile_b, INPUT_DIM), lambda i: (i, 0)),         # x: row-tiled
        pl.BlockSpec(init_bn.shape, lambda i: (0, 0)),               # weights: VMEM-resident
        pl.BlockSpec(bn_off.shape, lambda i: (0, 0)),
        pl.BlockSpec(shared_fc.shape, lambda i: (0, 0, 0)),
        pl.BlockSpec(fc_spec.shape, lambda i: (0, 0, 0)),
        pl.BlockSpec(att_fc.shape, lambda i: (0, 0, 0)),
        pl.BlockSpec(final_fc.shape, lambda i: (0, 0)),
    ]
    out_specs = pl.BlockSpec((tile_b, OUT_W), lambda i: (i, 0))      # lane-dense output

    flops = 2 * B * ((1 + N_STEPS) * (INPUT_DIM * GLU_W + N_INDEPENDENT * HID * GLU_W)
                     + N_STEPS * HID * INPUT_DIM + HID * OUT_W)
    transcendentals = B * ((N_SHARED + N_INDEPENDENT) * (1 + N_STEPS) * HID
                           + N_STEPS * INPUT_DIM)
    nbytes = lambda a: int(np.prod(a.shape)) * a.dtype.itemsize
    bytes_accessed = nbytes(x) + sum(nbytes(p) for p in params) + B * OUT_W * 4

    y = pl.pallas_call(
        tabnet_kernel,
        out_shape=jax.ShapeDtypeStruct((B, OUT_W), jnp.float32),
        grid=grid,
        in_specs=in_specs,
        out_specs=out_specs,
        compiler_params=pltpu.CompilerParams(dimension_semantics=("parallel",)),
        cost_estimate=pl.CostEstimate(flops=flops,
                                      transcendentals=transcendentals,
                                      bytes_accessed=bytes_accessed),
    )(x, *params)

    out = y[:, :OUTPUT_DIM]
    m_loss = jnp.mean(y[:, OUTPUT_DIM]) / N_STEPS
    return out, m_loss


def make_params(key):
    keys = iter(jax.random.split(key, 32))
    nxt = lambda: next(keys)

    def xavier_t(k, in_dim, out_dim, gain):
        # torch xavier_normal_ on weight (out, in); return transposed (in, out)
        std = gain * np.sqrt(2.0 / (in_dim + out_dim))
        return (std * jax.random.normal(k, (out_dim, in_dim), jnp.float32)).T

    def bn_fold(k, dim, eps=1e-5):
        k1, k2, k3, k4 = jax.random.split(k, 4)
        w = 1.0 + 0.1 * jax.random.normal(k1, (dim,), jnp.float32)
        b = 0.1 * jax.random.normal(k2, (dim,), jnp.float32)
        mean = 0.1 * jax.random.normal(k3, (dim,), jnp.float32)
        var = 1.0 + 0.1 * jnp.abs(jax.random.normal(k4, (dim,), jnp.float32))
        s = w / jnp.sqrt(var + eps)
        o = b - mean * s
        return s, o

    # ---- raw (torch-layout) parameters ----
    init_s, init_o = bn_fold(nxt(), INPUT_DIM)                       # initial BN

    gain0 = np.sqrt((INPUT_DIM + 2 * ND_NA) / np.sqrt(INPUT_DIM))
    shared_fc_t = xavier_t(nxt(), INPUT_DIM, 2 * ND_NA, gain0)       # (16, 216)

    gain1 = np.sqrt((ND_NA + 2 * ND_NA) / np.sqrt(ND_NA))
    fc_spec_t = [xavier_t(nxt(), ND_NA, 2 * ND_NA, gain1)
                 for _ in range(N_INDEPENDENT * (1 + N_STEPS))]      # 4 x (108, 216)

    n_bn216 = (N_SHARED + N_INDEPENDENT) * (1 + N_STEPS)             # 6 GLU GBNs
    bn216 = [bn_fold(nxt(), 2 * ND_NA) for _ in range(n_bn216)]

    gain_att = np.sqrt((N_A + INPUT_DIM) / np.sqrt(4 * N_A))
    att_fc_t = [xavier_t(nxt(), N_A, INPUT_DIM, gain_att)
                for _ in range(N_STEPS)]                             # (80, 16)
    att_bn = [bn_fold(nxt(), INPUT_DIM) for _ in range(N_STEPS)]

    gain_fin = np.sqrt((N_D + OUTPUT_DIM) / np.sqrt(4 * N_D))
    final_fc_t = xavier_t(nxt(), N_D, OUTPUT_DIM, gain_fin)          # (28, 4)

    # ---- lane-aligned packing: fold GBN scales into weights, pad to 128/256 ----
    def pack_glu(w_t, s, o, in_pad):
        w = w_t * s[None, :]                                          # fold BN scale
        in_dim = w_t.shape[0]
        w_pad = jnp.zeros((in_pad, GLU_W), jnp.float32)
        w_pad = w_pad.at[:in_dim, :ND_NA].set(w[:, :ND_NA])           # value half
        w_pad = w_pad.at[:in_dim, HID:HID + ND_NA].set(w[:, ND_NA:])  # gate half
        o_pad = jnp.zeros((GLU_W,), jnp.float32)                      # padded offsets = 0
        o_pad = o_pad.at[:ND_NA].set(o[:ND_NA])
        o_pad = o_pad.at[HID:HID + ND_NA].set(o[ND_NA:])
        return w_pad, o_pad

    shared_list, spec_list = [], []
    bn_off_rows = [None] * n_bn216
    for t in range(1 + N_STEPS):
        base = (N_SHARED + N_INDEPENDENT) * t
        s, o = bn216[base]
        w_pad, o_pad = pack_glu(shared_fc_t, s, o, INPUT_DIM)         # per-transformer copy
        shared_list.append(w_pad)
        bn_off_rows[base] = o_pad
        for j in range(N_INDEPENDENT):
            s, o = bn216[base + 1 + j]
            w_pad, o_pad = pack_glu(fc_spec_t[N_INDEPENDENT * t + j], s, o, HID)
            spec_list.append(w_pad)
            bn_off_rows[base + 1 + j] = o_pad

    shared_fc = jnp.stack(shared_list).astype(jnp.bfloat16)           # (2, 16, 256)
    fc_spec = jnp.stack(spec_list).astype(jnp.bfloat16)               # (4, 128, 256)
    bn_off = jnp.stack(bn_off_rows)                                   # (6, 256) f32

    # attentive transformer: fold GBN scale; head slice -> zero rows 0..n_d-1;
    # GBN offset rides bias row 127 (hidden lane 127 is provably zero, set to 1 in-kernel)
    att_list = []
    for step in range(N_STEPS):
        s, o = att_bn[step]
        w = att_fc_t[step] * s[None, :]                               # (80, 16)
        w_pad = jnp.zeros((HID, INPUT_DIM), jnp.float32)
        w_pad = w_pad.at[N_D:N_D + N_A, :].set(w)
        w_pad = w_pad.at[HID - 1, :].set(o)
        att_list.append(w_pad)
    att_fc = jnp.stack(att_list).astype(jnp.bfloat16)                 # (1, 128, 16)

    # final mapping padded to (128, 128): rows >= n_d and cols >= output_dim are zero
    final_fc = (jnp.zeros((HID, OUT_W), jnp.float32)
                .at[:N_D, :OUTPUT_DIM].set(final_fc_t)).astype(jnp.bfloat16)

    # initial BN scale/offset packed into a tiny sublane-aligned array (rows 0/1)
    init_bn = (jnp.zeros((8, INPUT_DIM), jnp.float32)
               .at[0].set(init_s).at[1].set(init_o))

    return (init_bn, bn_off, shared_fc, fc_spec, att_fc, final_fc)


if __name__ == "__main__":
    key = jax.random.PRNGKey(0)
    kx, kp = jax.random.split(key)
    x = jax.random.normal(kx, (BATCH, INPUT_DIM), jnp.float32)
    params = make_params(kp)

    out, m_loss = jax.jit(tabnet_forward)(x, params)
    out = jax.block_until_ready(out)
    m_loss = jax.block_until_ready(m_loss)

    assert out.shape == (BATCH, OUTPUT_DIM)
    assert bool(jnp.all(jnp.isfinite(out))) and bool(jnp.isfinite(m_loss))
    print("KERNEL_OK")
</pallas_src>

<mosaic_0001>
module attributes {stable_mosaic.version = 11 : i64} {
  func.func @tabnet_kernel(%arg0: i32, %arg1: memref<8x16xf32, #tpu.memory_space<vmem>>, %arg2: memref<8x16xf32, #tpu.memory_space<vmem>>, %arg3: memref<6x256xf32, #tpu.memory_space<vmem>>, %arg4: memref<2x16x256xbf16, #tpu.memory_space<vmem>>, %arg5: memref<4x128x256xbf16, #tpu.memory_space<vmem>>, %arg6: memref<1x128x16xbf16, #tpu.memory_space<vmem>>, %arg7: memref<128x128xbf16, #tpu.memory_space<vmem>>, %arg8: memref<8x128xf32, #tpu.memory_space<vmem>>) attributes {dimension_semantics = [#tpu.dimension_semantics<parallel>], iteration_bounds = array<i64: 1>, scalar_prefetch = 0 : i64, scratch_operands = 0 : i64, tpu.core_type = #tpu.core_type<tc>, window_params = [{transform_indices = @transform_0, window_bounds = array<i64: 8, 16>}, {pipeline_mode = #tpu.pipeline_mode<synchronous>, transform_indices = @transform_1, window_bounds = array<i64: 8, 16>}, {pipeline_mode = #tpu.pipeline_mode<synchronous>, transform_indices = @transform_2, window_bounds = array<i64: 6, 256>}, {pipeline_mode = #tpu.pipeline_mode<synchronous>, transform_indices = @transform_3, window_bounds = array<i64: 2, 16, 256>}, {pipeline_mode = #tpu.pipeline_mode<synchronous>, transform_indices = @transform_4, window_bounds = array<i64: 4, 128, 256>}, {pipeline_mode = #tpu.pipeline_mode<synchronous>, transform_indices = @transform_5, window_bounds = array<i64: 1, 128, 16>}, {pipeline_mode = #tpu.pipeline_mode<synchronous>, transform_indices = @transform_6, window_bounds = array<i64: 128, 128>}, {transform_indices = @transform_7, window_bounds = array<i64: 8, 128>}]} {
    %c0 = arith.constant 0 : index
    %c0_0 = arith.constant 0 : index
    %0 = vector.load %arg1[%c0, %c0_0] : memref<8x16xf32, #tpu.memory_space<vmem>>, vector<8x16xf32>
    %c0_1 = arith.constant 0 : index
    %c0_2 = arith.constant 0 : index
    %1 = vector.load %arg2[%c0_1, %c0_2] : memref<8x16xf32, #tpu.memory_space<vmem>>, vector<1x16xf32>
    %2 = vector.broadcast %1 : vector<1x16xf32> to vector<8x16xf32>
    %3 = arith.mulf %0, %2 : vector<8x16xf32>
    %c1 = arith.constant 1 : index
    %c0_3 = arith.constant 0 : index
    %4 = vector.load %arg2[%c1, %c0_3] : memref<8x16xf32, #tpu.memory_space<vmem>>, vector<1x16xf32>
    %5 = vector.broadcast %4 : vector<1x16xf32> to vector<8x16xf32>
    %6 = arith.addf %3, %5 : vector<8x16xf32>
    %7 = tpu.iota {dimensions = array<i32: 1>} : vector<1x128xi32>
    %c127_i32 = arith.constant 127 : i32
    %8 = vector.broadcast %c127_i32 : i32 to vector<1x128xi32>
    %9 = arith.cmpi eq, %7, %8 : vector<1x128xi32>
    %10 = arith.extui %9 : vector<1x128xi1> to vector<1x128xi32>
    %11 = arith.sitofp %10 : vector<1x128xi32> to vector<1x128xf32>
    %12 = tpu.iota {dimensions = array<i32: 1>} : vector<1x128xi32>
    %c4_i32 = arith.constant 4 : i32
    %13 = vector.broadcast %c4_i32 : i32 to vector<1x128xi32>
    %14 = arith.cmpi eq, %12, %13 : vector<1x128xi32>
    %15 = arith.extui %14 : vector<1x128xi1> to vector<1x128xi32>
    %16 = arith.sitofp %15 : vector<1x128xi32> to vector<1x128xf32>
    %c0_4 = arith.constant 0 : index
    %c0_5 = arith.constant 0 : index
    %c0_6 = arith.constant 0 : index
    %17 = vector.load %arg4[%c0_4, %c0_5, %c0_6] : memref<2x16x256xbf16, #tpu.memory_space<vmem>>, vector<1x16x256xbf16>
    %18 = vector.shape_cast %17 : vector<1x16x256xbf16> to vector<16x256xbf16>
    %c0_7 = arith.constant 0 : index
    %c0_8 = arith.constant 0 : index
    %19 = vector.load %arg3[%c0_7, %c0_8] : memref<6x256xf32, #tpu.memory_space<vmem>>, vector<1x256xf32>
    %20 = arith.truncf %6 : vector<8x16xf32> to vector<8x16xbf16>
    %cst = arith.constant dense<0.000000e+00> : vector<8x256xf32>
    %21 = tpu.matmul %20, %18, %cst {dimension_numbers = #tpu.dot_dimension_numbers<[1], [0], [0], [1], [0, 0, 1, 1], [], []>} : vector<8x16xbf16>, vector<16x256xbf16>, vector<8x256xf32> -> vector<8x256xf32>
    %22 = vector.broadcast %19 : vector<1x256xf32> to vector<8x256xf32>
    %23 = arith.addf %21, %22 : vector<8x256xf32>
    %24 = vector.extract_strided_slice %23 {offsets = [0, 0], sizes = [8, 128], strides = [1, 1]} : vector<8x256xf32> to vector<8x128xf32>
    %25 = vector.extract_strided_slice %23 {offsets = [0, 128], sizes = [8, 128], strides = [1, 1]} : vector<8x256xf32> to vector<8x128xf32>
    %26 = arith.negf %25 : vector<8x128xf32>
    %27 = math.exp %26 : vector<8x128xf32>
    %cst_9 = arith.constant 1.000000e+00 : f32
    %28 = vector.broadcast %cst_9 : f32 to vector<8x128xf32>
    %29 = arith.addf %28, %27 : vector<8x128xf32>
    %30 = arith.divf %28, %29 : vector<8x128xf32>
    %31 = arith.mulf %24, %30 : vector<8x128xf32>
    %c0_10 = arith.constant 0 : index
    %c0_11 = arith.constant 0 : index
    %c0_12 = arith.constant 0 : index
    %32 = vector.load %arg5[%c0_10, %c0_11, %c0_12] : memref<4x128x256xbf16, #tpu.memory_space<vmem>>, vector<1x128x256xbf16>
    %33 = vector.shape_cast %32 : vector<1x128x256xbf16> to vector<128x256xbf16>
    %c1_13 = arith.constant 1 : index
    %c0_14 = arith.constant 0 : index
    %34 = vector.load %arg3[%c1_13, %c0_14] : memref<6x256xf32, #tpu.memory_space<vmem>>, vector<1x256xf32>
    %35 = arith.truncf %31 : vector<8x128xf32> to vector<8x128xbf16>
    %cst_15 = arith.constant dense<0.000000e+00> : vector<8x256xf32>
    %36 = tpu.matmul %35, %33, %cst_15 {dimension_numbers = #tpu.dot_dimension_numbers<[1], [0], [0], [1], [0, 0, 1, 1], [], []>} : vector<8x128xbf16>, vector<128x256xbf16>, vector<8x256xf32> -> vector<8x256xf32>
    %37 = vector.broadcast %34 : vector<1x256xf32> to vector<8x256xf32>
    %38 = arith.addf %36, %37 : vector<8x256xf32>
    %39 = vector.extract_strided_slice %38 {offsets = [0, 0], sizes = [8, 128], strides = [1, 1]} : vector<8x256xf32> to vector<8x128xf32>
    %40 = vector.extract_strided_slice %38 {offsets = [0, 128], sizes = [8, 128], strides = [1, 1]} : vector<8x256xf32> to vector<8x128xf32>
    %41 = arith.negf %40 : vector<8x128xf32>
    %42 = math.exp %41 : vector<8x128xf32>
    %cst_16 = arith.constant 1.000000e+00 : f32
    %43 = vector.broadcast %cst_16 : f32 to vector<8x128xf32>
    %44 = arith.addf %43, %42 : vector<8x128xf32>
    %45 = arith.divf %43, %44 : vector<8x128xf32>
    %46 = arith.mulf %39, %45 : vector<8x128xf32>
    %47 = arith.addf %31, %46 : vector<8x128xf32>
    %cst_17 = arith.constant 0.707106769 : f32
    %48 = vector.broadcast %cst_17 : f32 to vector<8x128xf32>
    %49 = arith.mulf %47, %48 : vector<8x128xf32>
    %c1_18 = arith.constant 1 : index
    %c0_19 = arith.constant 0 : index
    %c0_20 = arith.constant 0 : index
    %50 = vector.load %arg5[%c1_18, %c0_19, %c0_20] : memref<4x128x256xbf16, #tpu.memory_space<vmem>>, vector<1x128x256xbf16>
    %51 = vector.shape_cast %50 : vector<1x128x256xbf16> to vector<128x256xbf16>
    %c2 = arith.constant 2 : index
    %c0_21 = arith.constant 0 : index
    %52 = vector.load %arg3[%c2, %c0_21] : memref<6x256xf32, #tpu.memory_space<vmem>>, vector<1x256xf32>
    %53 = arith.truncf %49 : vector<8x128xf32> to vector<8x128xbf16>
    %cst_22 = arith.constant dense<0.000000e+00> : vector<8x256xf32>
    %54 = tpu.matmul %53, %51, %cst_22 {dimension_numbers = #tpu.dot_dimension_numbers<[1], [0], [0], [1], [0, 0, 1, 1], [], []>} : vector<8x128xbf16>, vector<128x256xbf16>, vector<8x256xf32> -> vector<8x256xf32>
    %55 = vector.broadcast %52 : vector<1x256xf32> to vector<8x256xf32>
    %56 = arith.addf %54, %55 : vector<8x256xf32>
    %57 = vector.extract_strided_slice %56 {offsets = [0, 0], sizes = [8, 128], strides = [1, 1]} : vector<8x256xf32> to vector<8x128xf32>
    %58 = vector.extract_strided_slice %56 {offsets = [0, 128], sizes = [8, 128], strides = [1, 1]} : vector<8x256xf32> to vector<8x128xf32>
    %59 = arith.negf %58 : vector<8x128xf32>
    %60 = math.exp %59 : vector<8x128xf32>
    %cst_23 = arith.constant 1.000000e+00 : f32
    %61 = vector.broadcast %cst_23 : f32 to vector<8x128xf32>
    %62 = arith.addf %61, %60 : vector<8x128xf32>
    %63 = arith.divf %61, %62 : vector<8x128xf32>
    %64 = arith.mulf %57, %63 : vector<8x128xf32>
    %65 = arith.addf %49, %64 : vector<8x128xf32>
    %cst_24 = arith.constant 0.707106769 : f32
    %66 = vector.broadcast %cst_24 : f32 to vector<8x128xf32>
    %67 = arith.mulf %65, %66 : vector<8x128xf32>
    %68 = vector.broadcast %11 : vector<1x128xf32> to vector<8x128xf32>
    %69 = arith.addf %67, %68 : vector<8x128xf32>
    %70 = arith.truncf %69 : vector<8x128xf32> to vector<8x128xbf16>
    %c0_25 = arith.constant 0 : index
    %c0_26 = arith.constant 0 : index
    %c0_27 = arith.constant 0 : index
    %71 = vector.load %arg6[%c0_25, %c0_26, %c0_27] : memref<1x128x16xbf16, #tpu.memory_space<vmem>>, vector<1x128x16xbf16>
    %72 = vector.shape_cast %71 : vector<1x128x16xbf16> to vector<128x16xbf16>
    %cst_28 = arith.constant dense<0.000000e+00> : vector<8x16xf32>
    %73 = tpu.matmul %70, %72, %cst_28 {dimension_numbers = #tpu.dot_dimension_numbers<[1], [0], [0], [1], [0, 0, 1, 1], [], []>} : vector<8x128xbf16>, vector<128x16xbf16>, vector<8x16xf32> -> vector<8x16xf32>
    %cst_29 = arith.constant dense<0xFF800000> : vector<8xf32>
    %74 = vector.multi_reduction <maximumf>, %73, %cst_29 [1] : vector<8x16xf32> to vector<8xf32>
    %75 = vector.shape_cast %74 : vector<8xf32> to vector<8x1xf32>
    %76 = vector.broadcast %75 : vector<8x1xf32> to vector<8x16xf32>
    %77 = arith.subf %73, %76 : vector<8x16xf32>
    %cst_30 = arith.constant 5.000000e-01 : f32
    %78 = vector.broadcast %cst_30 : f32 to vector<8x16xf32>
    %79 = arith.mulf %77, %78 : vector<8x16xf32>
    %cst_31 = arith.constant -1.000000e+00 : f32
    %80 = vector.broadcast %cst_31 : f32 to vector<8x1xf32>
    %81 = vector.broadcast %80 : vector<8x1xf32> to vector<8x16xf32>
    %82 = arith.subf %79, %81 : vector<8x16xf32>
    %cst_32 = arith.constant 0.000000e+00 : f32
    %83 = vector.broadcast %cst_32 : f32 to vector<8x16xf32>
    %84 = arith.maximumf %82, %83 : vector<8x16xf32>
    %85 = arith.mulf %84, %84 : vector<8x16xf32>
    %cst_33 = arith.constant dense<0.000000e+00> : vector<8xf32>
    %86 = vector.multi_reduction <add>, %85, %cst_33 [1] : vector<8x16xf32> to vector<8xf32>
    %87 = vector.shape_cast %86 : vector<8xf32> to vector<8x1xf32>
    %cst_34 = arith.constant 1.000000e+00 : f32
    %88 = vector.broadcast %cst_34 : f32 to vector<8x1xf32>
    %89 = arith.subf %87, %88 : vector<8x1xf32>
    %cst_35 = arith.constant dense<0.000000e+00> : vector<8xf32>
    %90 = vector.multi_reduction <add>, %84, %cst_35 [1] : vector<8x16xf32> to vector<8xf32>
    %91 = vector.shape_cast %90 : vector<8xf32> to vector<8x1xf32>
    %cst_36 = arith.constant 2.000000e+00 : f32
    %92 = vector.broadcast %cst_36 : f32 to vector<8x1xf32>
    %93 = arith.mulf %92, %91 : vector<8x1xf32>
    %94 = arith.divf %89, %93 : vector<8x1xf32>
    %95 = arith.addf %80, %94 : vector<8x1xf32>
    %cst_37 = arith.constant -1.000000e+00 : f32
    %cst_38 = arith.constant 0.000000e+00 : f32
    %96 = vector.broadcast %cst_37 : f32 to vector<8x1xf32>
    %97 = arith.maximumf %96, %95 : vector<8x1xf32>
    %98 = vector.broadcast %cst_38 : f32 to vector<8x1xf32>
    %99 = arith.minimumf %98, %97 : vector<8x1xf32>
    %100 = vector.broadcast %99 : vector<8x1xf32> to vector<8x16xf32>
    %101 = arith.subf %79, %100 : vector<8x16xf32>
    %cst_39 = arith.constant 0.000000e+00 : f32
    %102 = vector.broadcast %cst_39 : f32 to vector<8x16xf32>
    %103 = arith.maximumf %101, %102 : vector<8x16xf32>
    %104 = arith.mulf %103, %103 : vector<8x16xf32>
    %cst_40 = arith.constant dense<0.000000e+00> : vector<8xf32>
    %105 = vector.multi_reduction <add>, %104, %cst_40 [1] : vector<8x16xf32> to vector<8xf32>
    %106 = vector.shape_cast %105 : vector<8xf32> to vector<8x1xf32>
    %cst_41 = arith.constant 1.000000e+00 : f32
    %107 = vector.broadcast %cst_41 : f32 to vector<8x1xf32>
    %108 = arith.subf %106, %107 : vector<8x1xf32>
    %cst_42 = arith.constant dense<0.000000e+00> : vector<8xf32>
    %109 = vector.multi_reduction <add>, %103, %cst_42 [1] : vector<8x16xf32> to vector<8xf32>
    %110 = vector.shape_cast %109 : vector<8xf32> to vector<8x1xf32>
    %cst_43 = arith.constant 2.000000e+00 : f32
    %111 = vector.broadcast %cst_43 : f32 to vector<8x1xf32>
    %112 = arith.mulf %111, %110 : vector<8x1xf32>
    %113 = arith.divf %108, %112 : vector<8x1xf32>
    %114 = arith.addf %99, %113 : vector<8x1xf32>
    %cst_44 = arith.constant -1.000000e+00 : f32
    %cst_45 = arith.constant 0.000000e+00 : f32
    %115 = vector.broadcast %cst_44 : f32 to vector<8x1xf32>
    %116 = arith.maximumf %115, %114 : vector<8x1xf32>
    %117 = vector.broadcast %cst_45 : f32 to vector<8x1xf32>
    %118 = arith.minimumf %117, %116 : vector<8x1xf32>
    %119 = vector.broadcast %118 : vector<8x1xf32> to vector<8x16xf32>
    %120 = arith.subf %79, %119 : vector<8x16xf32>
    %cst_46 = arith.constant 0.000000e+00 : f32
    %121 = vector.broadcast %cst_46 : f32 to vector<8x16xf32>
    %122 = arith.maximumf %120, %121 : vector<8x16xf32>
    %123 = arith.mulf %122, %122 : vector<8x16xf32>
    %cst_47 = arith.constant dense<0.000000e+00> : vector<8xf32>
    %124 = vector.multi_reduction <add>, %123, %cst_47 [1] : vector<8x16xf32> to vector<8xf32>
    %125 = vector.shape_cast %124 : vector<8xf32> to vector<8x1xf32>
    %cst_48 = arith.constant 1.000000e+00 : f32
    %126 = vector.broadcast %cst_48 : f32 to vector<8x1xf32>
    %127 = arith.subf %125, %126 : vector<8x1xf32>
    %cst_49 = arith.constant dense<0.000000e+00> : vector<8xf32>
    %128 = vector.multi_reduction <add>, %122, %cst_49 [1] : vector<8x16xf32> to vector<8xf32>
    %129 = vector.shape_cast %128 : vector<8xf32> to vector<8x1xf32>
    %cst_50 = arith.constant 2.000000e+00 : f32
    %130 = vector.broadcast %cst_50 : f32 to vector<8x1xf32>
    %131 = arith.mulf %130, %129 : vector<8x1xf32>
    %132 = arith.divf %127, %131 : vector<8x1xf32>
    %133 = arith.addf %118, %132 : vector<8x1xf32>
    %cst_51 = arith.constant -1.000000e+00 : f32
    %cst_52 = arith.constant 0.000000e+00 : f32
    %134 = vector.broadcast %cst_51 : f32 to vector<8x1xf32>
    %135 = arith.maximumf %134, %133 : vector<8x1xf32>
    %136 = vector.broadcast %cst_52 : f32 to vector<8x1xf32>
    %137 = arith.minimumf %136, %135 : vector<8x1xf32>
    %138 = vector.broadcast %137 : vector<8x1xf32> to vector<8x16xf32>
    %139 = arith.subf %79, %138 : vector<8x16xf32>
    %cst_53 = arith.constant 0.000000e+00 : f32
    %140 = vector.broadcast %cst_53 : f32 to vector<8x16xf32>
    %141 = arith.maximumf %139, %140 : vector<8x16xf32>
    %142 = arith.mulf %141, %141 : vector<8x16xf32>
    %cst_54 = arith.constant dense<0.000000e+00> : vector<8xf32>
    %143 = vector.multi_reduction <add>, %142, %cst_54 [1] : vector<8x16xf32> to vector<8xf32>
    %144 = vector.shape_cast %143 : vector<8xf32> to vector<8x1xf32>
    %cst_55 = arith.constant 1.000000e+00 : f32
    %145 = vector.broadcast %cst_55 : f32 to vector<8x1xf32>
    %146 = arith.subf %144, %145 : vector<8x1xf32>
    %cst_56 = arith.constant dense<0.000000e+00> : vector<8xf32>
    %147 = vector.multi_reduction <add>, %141, %cst_56 [1] : vector<8x16xf32> to vector<8xf32>
    %148 = vector.shape_cast %147 : vector<8xf32> to vector<8x1xf32>
    %cst_57 = arith.constant 2.000000e+00 : f32
    %149 = vector.broadcast %cst_57 : f32 to vector<8x1xf32>
    %150 = arith.mulf %149, %148 : vector<8x1xf32>
    %151 = arith.divf %146, %150 : vector<8x1xf32>
    %152 = arith.addf %137, %151 : vector<8x1xf32>
    %cst_58 = arith.constant -1.000000e+00 : f32
    %cst_59 = arith.constant 0.000000e+00 : f32
    %153 = vector.broadcast %cst_58 : f32 to vector<8x1xf32>
    %154 = arith.maximumf %153, %152 : vector<8x1xf32>
    %155 = vector.broadcast %cst_59 : f32 to vector<8x1xf32>
    %156 = arith.minimumf %155, %154 : vector<8x1xf32>
    %157 = vector.broadcast %156 : vector<8x1xf32> to vector<8x16xf32>
    %158 = arith.subf %79, %157 : vector<8x16xf32>
    %cst_60 = arith.constant 0.000000e+00 : f32
    %159 = vector.broadcast %cst_60 : f32 to vector<8x16xf32>
    %160 = arith.maximumf %158, %159 : vector<8x16xf32>
    %161 = arith.mulf %160, %160 : vector<8x16xf32>
    %cst_61 = arith.constant dense<0.000000e+00> : vector<8xf32>
    %162 = vector.multi_reduction <add>, %161, %cst_61 [1] : vector<8x16xf32> to vector<8xf32>
    %163 = vector.shape_cast %162 : vector<8xf32> to vector<8x1xf32>
    %cst_62 = arith.constant 1.000000e+00 : f32
    %164 = vector.broadcast %cst_62 : f32 to vector<8x1xf32>
    %165 = arith.subf %163, %164 : vector<8x1xf32>
    %cst_63 = arith.constant dense<0.000000e+00> : vector<8xf32>
    %166 = vector.multi_reduction <add>, %160, %cst_63 [1] : vector<8x16xf32> to vector<8xf32>
    %167 = vector.shape_cast %166 : vector<8xf32> to vector<8x1xf32>
    %cst_64 = arith.constant 2.000000e+00 : f32
    %168 = vector.broadcast %cst_64 : f32 to vector<8x1xf32>
    %169 = arith.mulf %168, %167 : vector<8x1xf32>
    %170 = arith.divf %165, %169 : vector<8x1xf32>
    %171 = arith.addf %156, %170 : vector<8x1xf32>
    %cst_65 = arith.constant -1.000000e+00 : f32
    %cst_66 = arith.constant 0.000000e+00 : f32
    %172 = vector.broadcast %cst_65 : f32 to vector<8x1xf32>
    %173 = arith.maximumf %172, %171 : vector<8x1xf32>
    %174 = vector.broadcast %cst_66 : f32 to vector<8x1xf32>
    %175 = arith.minimumf %174, %173 : vector<8x1xf32>
    %176 = vector.broadcast %175 : vector<8x1xf32> to vector<8x16xf32>
    %177 = arith.subf %79, %176 : vector<8x16xf32>
    %cst_67 = arith.constant 0.000000e+00 : f32
    %178 = vector.broadcast %cst_67 : f32 to vector<8x16xf32>
    %179 = arith.maximumf %177, %178 : vector<8x16xf32>
    %180 = arith.mulf %179, %179 : vector<8x16xf32>
    %cst_68 = arith.constant dense<0.000000e+00> : vector<8xf32>
    %181 = vector.multi_reduction <add>, %180, %cst_68 [1] : vector<8x16xf32> to vector<8xf32>
    %182 = vector.shape_cast %181 : vector<8xf32> to vector<8x1xf32>
    %cst_69 = arith.constant 1.000000e+00 : f32
    %183 = vector.broadcast %cst_69 : f32 to vector<8x1xf32>
    %184 = arith.subf %182, %183 : vector<8x1xf32>
    %cst_70 = arith.constant dense<0.000000e+00> : vector<8xf32>
    %185 = vector.multi_reduction <add>, %179, %cst_70 [1] : vector<8x16xf32> to vector<8xf32>
    %186 = vector.shape_cast %185 : vector<8xf32> to vector<8x1xf32>
    %cst_71 = arith.constant 2.000000e+00 : f32
    %187 = vector.broadcast %cst_71 : f32 to vector<8x1xf32>
    %188 = arith.mulf %187, %186 : vector<8x1xf32>
    %189 = arith.divf %184, %188 : vector<8x1xf32>
    %190 = arith.addf %175, %189 : vector<8x1xf32>
    %cst_72 = arith.constant -1.000000e+00 : f32
    %cst_73 = arith.constant 0.000000e+00 : f32
    %191 = vector.broadcast %cst_72 : f32 to vector<8x1xf32>
    %192 = arith.maximumf %191, %190 : vector<8x1xf32>
    %193 = vector.broadcast %cst_73 : f32 to vector<8x1xf32>
    %194 = arith.minimumf %193, %192 : vector<8x1xf32>
    %195 = vector.broadcast %194 : vector<8x1xf32> to vector<8x16xf32>
    %196 = arith.subf %79, %195 : vector<8x16xf32>
    %cst_74 = arith.constant 0.000000e+00 : f32
    %197 = vector.broadcast %cst_74 : f32 to vector<8x16xf32>
    %198 = arith.maximumf %196, %197 : vector<8x16xf32>
    %199 = arith.mulf %198, %198 : vector<8x16xf32>
    %cst_75 = arith.constant dense<0.000000e+00> : vector<8xf32>
    %200 = vector.multi_reduction <add>, %199, %cst_75 [1] : vector<8x16xf32> to vector<8xf32>
    %201 = vector.shape_cast %200 : vector<8xf32> to vector<8x1xf32>
    %cst_76 = arith.constant 1.000000e+00 : f32
    %202 = vector.broadcast %cst_76 : f32 to vector<8x1xf32>
    %203 = arith.subf %201, %202 : vector<8x1xf32>
    %cst_77 = arith.constant dense<0.000000e+00> : vector<8xf32>
    %204 = vector.multi_reduction <add>, %198, %cst_77 [1] : vector<8x16xf32> to vector<8xf32>
    %205 = vector.shape_cast %204 : vector<8xf32> to vector<8x1xf32>
    %cst_78 = arith.constant 2.000000e+00 : f32
    %206 = vector.broadcast %cst_78 : f32 to vector<8x1xf32>
    %207 = arith.mulf %206, %205 : vector<8x1xf32>
    %208 = arith.divf %203, %207 : vector<8x1xf32>
    %209 = arith.addf %194, %208 : vector<8x1xf32>
    %cst_79 = arith.constant -1.000000e+00 : f32
    %cst_80 = arith.constant 0.000000e+00 : f32
    %210 = vector.broadcast %cst_79 : f32 to vector<8x1xf32>
    %211 = arith.maximumf %210, %209 : vector<8x1xf32>
    %212 = vector.broadcast %cst_80 : f32 to vector<8x1xf32>
    %213 = arith.minimumf %212, %211 : vector<8x1xf32>
    %214 = vector.broadcast %213 : vector<8x1xf32> to vector<8x16xf32>
    %215 = arith.subf %79, %214 : vector<8x16xf32>
    %cst_81 = arith.constant 0.000000e+00 : f32
    %216 = vector.broadcast %cst_81 : f32 to vector<8x16xf32>
    %217 = arith.maximumf %215, %216 : vector<8x16xf32>
    %218 = arith.mulf %217, %217 : vector<8x16xf32>
    %cst_82 = arith.constant dense<0.000000e+00> : vector<8xf32>
    %219 = vector.multi_reduction <add>, %218, %cst_82 [1] : vector<8x16xf32> to vector<8xf32>
    %220 = vector.shape_cast %219 : vector<8xf32> to vector<8x1xf32>
    %cst_83 = arith.constant 1.000000e+00 : f32
    %221 = vector.broadcast %cst_83 : f32 to vector<8x1xf32>
    %222 = arith.subf %220, %221 : vector<8x1xf32>
    %cst_84 = arith.constant dense<0.000000e+00> : vector<8xf32>
    %223 = vector.multi_reduction <add>, %217, %cst_84 [1] : vector<8x16xf32> to vector<8xf32>
    %224 = vector.shape_cast %223 : vector<8xf32> to vector<8x1xf32>
    %cst_85 = arith.constant 2.000000e+00 : f32
    %225 = vector.broadcast %cst_85 : f32 to vector<8x1xf32>
    %226 = arith.mulf %225, %224 : vector<8x1xf32>
    %227 = arith.divf %222, %226 : vector<8x1xf32>
    %228 = arith.addf %213, %227 : vector<8x1xf32>
    %cst_86 = arith.constant -1.000000e+00 : f32
    %cst_87 = arith.constant 0.000000e+00 : f32
    %229 = vector.broadcast %cst_86 : f32 to vector<8x1xf32>
    %230 = arith.maximumf %229, %228 : vector<8x1xf32>
    %231 = vector.broadcast %cst_87 : f32 to vector<8x1xf32>
    %232 = arith.minimumf %231, %230 : vector<8x1xf32>
    %233 = vector.broadcast %232 : vector<8x1xf32> to vector<8x16xf32>
    %234 = arith.subf %79, %233 : vector<8x16xf32>
    %cst_88 = arith.constant 0.000000e+00 : f32
    %235 = vector.broadcast %cst_88 : f32 to vector<8x16xf32>
    %236 = arith.maximumf %234, %235 : vector<8x16xf32>
    %237 = arith.mulf %236, %236 : vector<8x16xf32>
    %cst_89 = arith.constant 1.000000e-15 : f32
    %238 = vector.broadcast %cst_89 : f32 to vector<8x16xf32>
    %239 = arith.addf %237, %238 : vector<8x16xf32>
    %240 = math.log %239 : vector<8x16xf32>
    %241 = arith.mulf %237, %240 : vector<8x16xf32>
    %cst_90 = arith.constant dense<0.000000e+00> : vector<8xf32>
    %242 = vector.multi_reduction <add>, %241, %cst_90 [1] : vector<8x16xf32> to vector<8xf32>
    %243 = vector.shape_cast %242 : vector<8xf32> to vector<8x1xf32>
    %244 = arith.mulf %237, %6 : vector<8x16xf32>
    %c1_91 = arith.constant 1 : index
    %c0_92 = arith.constant 0 : index
    %c0_93 = arith.constant 0 : index
    %245 = vector.load %arg4[%c1_91, %c0_92, %c0_93] : memref<2x16x256xbf16, #tpu.memory_space<vmem>>, vector<1x16x256xbf16>
    %246 = vector.shape_cast %245 : vector<1x16x256xbf16> to vector<16x256xbf16>
    %c3 = arith.constant 3 : index
    %c0_94 = arith.constant 0 : index
    %247 = vector.load %arg3[%c3, %c0_94] : memref<6x256xf32, #tpu.memory_space<vmem>>, vector<1x256xf32>
    %248 = arith.truncf %244 : vector<8x16xf32> to vector<8x16xbf16>
    %cst_95 = arith.constant dense<0.000000e+00> : vector<8x256xf32>
    %249 = tpu.matmul %248, %246, %cst_95 {dimension_numbers = #tpu.dot_dimension_numbers<[1], [0], [0], [1], [0, 0, 1, 1], [], []>} : vector<8x16xbf16>, vector<16x256xbf16>, vector<8x256xf32> -> vector<8x256xf32>
    %250 = vector.broadcast %247 : vector<1x256xf32> to vector<8x256xf32>
    %251 = arith.addf %249, %250 : vector<8x256xf32>
    %252 = vector.extract_strided_slice %251 {offsets = [0, 0], sizes = [8, 128], strides = [1, 1]} : vector<8x256xf32> to vector<8x128xf32>
    %253 = vector.extract_strided_slice %251 {offsets = [0, 128], sizes = [8, 128], strides = [1, 1]} : vector<8x256xf32> to vector<8x128xf32>
    %254 = arith.negf %253 : vector<8x128xf32>
    %255 = math.exp %254 : vector<8x128xf32>
    %cst_96 = arith.constant 1.000000e+00 : f32
    %256 = vector.broadcast %cst_96 : f32 to vector<8x128xf32>
    %257 = arith.addf %256, %255 : vector<8x128xf32>
    %258 = arith.divf %256, %257 : vector<8x128xf32>
    %259 = arith.mulf %252, %258 : vector<8x128xf32>
    %c2_97 = arith.constant 2 : index
    %c0_98 = arith.constant 0 : index
    %c0_99 = arith.constant 0 : index
    %260 = vector.load %arg5[%c2_97, %c0_98, %c0_99] : memref<4x128x256xbf16, #tpu.memory_space<vmem>>, vector<1x128x256xbf16>
    %261 = vector.shape_cast %260 : vector<1x128x256xbf16> to vector<128x256xbf16>
    %c4 = arith.constant 4 : index
    %c0_100 = arith.constant 0 : index
    %262 = vector.load %arg3[%c4, %c0_100] : memref<6x256xf32, #tpu.memory_space<vmem>>, vector<1x256xf32>
    %263 = arith.truncf %259 : vector<8x128xf32> to vector<8x128xbf16>
    %cst_101 = arith.constant dense<0.000000e+00> : vector<8x256xf32>
    %264 = tpu.matmul %263, %261, %cst_101 {dimension_numbers = #tpu.dot_dimension_numbers<[1], [0], [0], [1], [0, 0, 1, 1], [], []>} : vector<8x128xbf16>, vector<128x256xbf16>, vector<8x256xf32> -> vector<8x256xf32>
    %265 = vector.broadcast %262 : vector<1x256xf32> to vector<8x256xf32>
    %266 = arith.addf %264, %265 : vector<8x256xf32>
    %267 = vector.extract_strided_slice %266 {offsets = [0, 0], sizes = [8, 128], strides = [1, 1]} : vector<8x256xf32> to vector<8x128xf32>
    %268 = vector.extract_strided_slice %266 {offsets = [0, 128], sizes = [8, 128], strides = [1, 1]} : vector<8x256xf32> to vector<8x128xf32>
    %269 = arith.negf %268 : vector<8x128xf32>
    %270 = math.exp %269 : vector<8x128xf32>
    %cst_102 = arith.constant 1.000000e+00 : f32
    %271 = vector.broadcast %cst_102 : f32 to vector<8x128xf32>
    %272 = arith.addf %271, %270 : vector<8x128xf32>
    %273 = arith.divf %271, %272 : vector<8x128xf32>
    %274 = arith.mulf %267, %273 : vector<8x128xf32>
    %275 = arith.addf %259, %274 : vector<8x128xf32>
    %cst_103 = arith.constant 0.707106769 : f32
    %276 = vector.broadcast %cst_103 : f32 to vector<8x128xf32>
    %277 = arith.mulf %275, %276 : vector<8x128xf32>
    %c3_104 = arith.constant 3 : index
    %c0_105 = arith.constant 0 : index
    %c0_106 = arith.constant 0 : index
    %278 = vector.load %arg5[%c3_104, %c0_105, %c0_106] : memref<4x128x256xbf16, #tpu.memory_space<vmem>>, vector<1x128x256xbf16>
    %279 = vector.shape_cast %278 : vector<1x128x256xbf16> to vector<128x256xbf16>
    %c5 = arith.constant 5 : index
    %c0_107 = arith.constant 0 : index
    %280 = vector.load %arg3[%c5, %c0_107] : memref<6x256xf32, #tpu.memory_space<vmem>>, vector<1x256xf32>
    %281 = arith.truncf %277 : vector<8x128xf32> to vector<8x128xbf16>
    %cst_108 = arith.constant dense<0.000000e+00> : vector<8x256xf32>
    %282 = tpu.matmul %281, %279, %cst_108 {dimension_numbers = #tpu.dot_dimension_numbers<[1], [0], [0], [1], [0, 0, 1, 1], [], []>} : vector<8x128xbf16>, vector<128x256xbf16>, vector<8x256xf32> -> vector<8x256xf32>
    %283 = vector.broadcast %280 : vector<1x256xf32> to vector<8x256xf32>
    %284 = arith.addf %282, %283 : vector<8x256xf32>
    %285 = vector.extract_strided_slice %284 {offsets = [0, 0], sizes = [8, 128], strides = [1, 1]} : vector<8x256xf32> to vector<8x128xf32>
    %286 = vector.extract_strided_slice %284 {offsets = [0, 128], sizes = [8, 128], strides = [1, 1]} : vector<8x256xf32> to vector<8x128xf32>
    %287 = arith.negf %286 : vector<8x128xf32>
    %288 = math.exp %287 : vector<8x128xf32>
    %cst_109 = arith.constant 1.000000e+00 : f32
    %289 = vector.broadcast %cst_109 : f32 to vector<8x128xf32>
    %290 = arith.addf %289, %288 : vector<8x128xf32>
    %291 = arith.divf %289, %290 : vector<8x128xf32>
    %292 = arith.mulf %285, %291 : vector<8x128xf32>
    %293 = arith.addf %277, %292 : vector<8x128xf32>
    %cst_110 = arith.constant 0.707106769 : f32
    %294 = vector.broadcast %cst_110 : f32 to vector<8x128xf32>
    %295 = arith.mulf %293, %294 : vector<8x128xf32>
    %cst_111 = arith.constant 0.000000e+00 : f32
    %296 = vector.broadcast %cst_111 : f32 to vector<8x128xf32>
    %297 = arith.cmpf ogt, %295, %296 : vector<8x128xf32>
    %cst_112 = arith.constant 2.500000e-01 : f32
    %298 = vector.broadcast %cst_112 : f32 to vector<8x128xf32>
    %299 = arith.mulf %298, %295 : vector<8x128xf32>
    %300 = arith.select %297, %295, %299 : vector<8x128xi1>, vector<8x128xf32>
    %301 = arith.truncf %300 : vector<8x128xf32> to vector<8x128xbf16>
    %c0_113 = arith.constant 0 : index
    %c0_114 = arith.constant 0 : index
    %302 = vector.load %arg7[%c0_113, %c0_114] : memref<128x128xbf16, #tpu.memory_space<vmem>>, vector<128x128xbf16>
    %cst_115 = arith.constant dense<0.000000e+00> : vector<8x128xf32>
    %303 = tpu.matmul %301, %302, %cst_115 {dimension_numbers = #tpu.dot_dimension_numbers<[1], [0], [0], [1], [0, 0, 1, 1], [], []>} : vector<8x128xbf16>, vector<128x128xbf16>, vector<8x128xf32> -> vector<8x128xf32>
    %304 = vector.broadcast %243 : vector<8x1xf32> to vector<8x128xf32>
    %305 = vector.broadcast %16 : vector<1x128xf32> to vector<8x128xf32>
    %306 = arith.mulf %304, %305 : vector<8x128xf32>
    %307 = arith.addf %303, %306 : vector<8x128xf32>
    %c0_116 = arith.constant 0 : index
    %c0_117 = arith.constant 0 : index
    %308 = vector.load %arg8[%c0_116, %c0_117] : memref<8x128xf32, #tpu.memory_space<vmem>>, vector<8x128xf32>
    tpu.vector_store %arg8[%c0_116, %c0_117], %307 {strides = array<i32>} : memref<8x128xf32, #tpu.memory_space<vmem>>, vector<8x128xf32>,
    return
  }
  func.func @transform_0(%arg0: i32) -> (i32, i32) {
    %c0_i32 = arith.constant 0 : i32
    %c0_i32_0 = arith.constant 0 : i32
    return %arg0, %c0_i32 : i32, i32
  }
  func.func @transform_1(%arg0: i32) -> (i32, i32) {
    %c0_i32 = arith.constant 0 : i32
    %c0_i32_0 = arith.constant 0 : i32
    %c0_i32_1 = arith.constant 0 : i32
    return %c0_i32, %c0_i32_0 : i32, i32
  }
  func.func @transform_2(%arg0: i32) -> (i32, i32) {
    %c0_i32 = arith.constant 0 : i32
    %c0_i32_0 = arith.constant 0 : i32
    %c0_i32_1 = arith.constant 0 : i32
    return %c0_i32, %c0_i32_0 : i32, i32
  }
  func.func @transform_3(%arg0: i32) -> (i32, i32, i32) {
    %c0_i32 = arith.constant 0 : i32
    %c0_i32_0 = arith.constant 0 : i32
    %c0_i32_1 = arith.constant 0 : i32
    %c0_i32_2 = arith.constant 0 : i32
    return %c0_i32, %c0_i32_0, %c0_i32_1 : i32, i32, i32
  }
  func.func @transform_4(%arg0: i32) -> (i32, i32, i32) {
    %c0_i32 = arith.constant 0 : i32
    %c0_i32_0 = arith.constant 0 : i32
    %c0_i32_1 = arith.constant 0 : i32
    %c0_i32_2 = arith.constant 0 : i32
    return %c0_i32, %c0_i32_0, %c0_i32_1 : i32, i32, i32
  }
  func.func @transform_5(%arg0: i32) -> (i32, i32, i32) {
    %c0_i32 = arith.constant 0 : i32
    %c0_i32_0 = arith.constant 0 : i32
    %c0_i32_1 = arith.constant 0 : i32
    %c0_i32_2 = arith.constant 0 : i32
    return %c0_i32, %c0_i32_0, %c0_i32_1 : i32, i32, i32
  }
  func.func @transform_6(%arg0: i32) -> (i32, i32) {
    %c0_i32 = arith.constant 0 : i32
    %c0_i32_0 = arith.constant 0 : i32
    %c0_i32_1 = arith.constant 0 : i32
    return %c0_i32, %c0_i32_0 : i32, i32
  }
  func.func @transform_7(%arg0: i32) -> (i32, i32) {
    %c0_i32 = arith.constant 0 : i32
    %c0_i32_0 = arith.constant 0 : i32
    return %arg0, %c0_i32 : i32, i32
  }
}

</mosaic_0001>

<llo_original>
// kernel: tabnet_forward.1
$region0: #{tabnet_forward.1}
  #allocation0 [shape = 'u32[]', space=smem, size = 0x4, offset = 0x4, fixed_abs, tag = 'smem constant byte address 0x4 - core index']
  #allocation1 [shape = 'u32[72,128]{1,0:T(1,128)}', space=vmem, size = 0x9000, scoped, tag = 'internal scratch']
  %s0 = inlined_call_operand.vmem [shape: f32[8,16], index: 0, kind: input, shape index: {}]
  %s1 = inlined_call_operand.hbm [shape: f32[8,16], index: 1, kind: input, shape index: {}]
  %s2 = inlined_call_operand.hbm [shape: f32[6,256], index: 2, kind: input, shape index: {}]
  %s3 = inlined_call_operand.hbm [shape: bf16[2,16,256], index: 3, kind: input, shape index: {}]
  %s4 = inlined_call_operand.hbm [shape: bf16[4,128,256], index: 4, kind: input, shape index: {}]
  %s5 = inlined_call_operand.vmem [shape: bf16[1,128,16], index: 5, kind: input, shape index: {}]
  %s6 = inlined_call_operand.vmem [shape: bf16[128,128], index: 6, kind: input, shape index: {}]
  %s7 = inlined_call_operand.vmem [shape: f32[8,128], index: 7, kind: output, shape index: {}]
  %s8 = sld [smem:[#allocation0]]
  $region54: #{tabnet_forward.1} parent=0
    _
  %s10 = ssub.s32 1, %s8
  %s11 = scalar_select 0, %s10, %s8
  $region1: #{tabnet_forward.1} parent=0
    #allocation2 [shape = 'u8[4096]{0}', space=vmem, size = 0x1000, scoped, tag = 'input window, operand 1, single buffered']
    #allocation3 [shape = 's32[1]{0}', space=sflag, size = 0x4, scoped, tag = 'scoped memory for tabnet_forward.1']
    #allocation4 [shape = 'u8[8192]{0}', space=vmem, size = 0x2000, scoped, tag = 'input window, operand 2, single buffered']
    #allocation5 [shape = 's32[1]{0}', space=sflag, size = 0x4, scoped, tag = 'scoped memory for tabnet_forward.1']
    #allocation6 [shape = 'u8[16384]{0}', space=vmem, size = 0x4000, scoped, tag = 'input window, operand 3, single buffered']
    #allocation7 [shape = 'u8[262144]{0}', space=vmem, size = 0x40000, scoped, tag = 'input window, operand 4, single buffered']
    #allocation8 [shape = 's32[1]{0}', space=sflag, size = 0x4, scoped, tag = 'scoped memory for tabnet_forward.1']
    %12 = vsyncpa [#allocation3], 0
    %13 = vsyncpa [#allocation5], 0
    %14 = vsyncpa [#allocation8], 0
    // Predicated region
    $region2: #{tabnet_forward.1} parent=1 // pred_check
      _
    $region3: #{tabnet_forward.1} parent=1 // pred_check_branch
      %16 = sbr.rel (0) target = $region5
    $region4: #{tabnet_forward.1} parent=1 // pred_region
      _
    $region5: #{tabnet_forward.1} parent=1 // pred_fallthru
      _
    // Predicated region
    $region6: #{tabnet_forward.1} parent=1 // pred_check
      _
    $region7: #{tabnet_forward.1} parent=1 // pred_check_branch
      %18 = sbr.rel (0) target = $region9
    $region8: #{tabnet_forward.1} parent=1 // pred_region
      %20 = vsyncadd [#allocation3], 0
      %s22 = sshll.u32 %s1, 4
      %s23 = int_to_ptr.hbm [resolvable:$true] %s22
      %s24 = sshll.u32 [#allocation2], 4
      %s25 = int_to_ptr.vmem [resolvable:$true] %s24
      %27 = dma.hbm_to_vmem [thread:$0]  %s23, 128, %s25, [#allocation3]
    $region9: #{tabnet_forward.1} parent=1 // pred_fallthru
      _
    // Predicated region
    $region10: #{tabnet_forward.1} parent=1 // pred_check
      _
    $region11: #{tabnet_forward.1} parent=1 // pred_check_branch
      %29 = sbr.rel (0) target = $region13
    $region12: #{tabnet_forward.1} parent=1 // pred_region
      %31 = vsyncadd [#allocation5], 0
      %s33 = sshll.u32 %s2, 4
      %s34 = int_to_ptr.hbm [resolvable:$true] %s33
      %s35 = sshll.u32 [#allocation4], 4
      %s36 = int_to_ptr.vmem [resolvable:$true] %s35
      %38 = dma.hbm_to_vmem [thread:$0]  %s34, 256, %s36, [#allocation5]
    $region13: #{tabnet_forward.1} parent=1 // pred_fallthru
      _
    // Predicated region
    $region14: #{tabnet_forward.1} parent=1 // pred_check
      _
    $region15: #{tabnet_forward.1} parent=1 // pred_check_branch
      %40 = sbr.rel (0) target = $region17
    $region16: #{tabnet_forward.1} parent=1 // pred_region
      %42 = vsyncadd [#allocation5], 0
      %s43 = sshll.u32 %s3, 4
      %s44 = int_to_ptr.hbm [resolvable:$true] %s43
      %s45 = sshll.u32 [#allocation6], 4
      %s46 = int_to_ptr.vmem [resolvable:$true] %s45
      %51 = dma.hbm_to_vmem [thread:$0]  %s44, 512, %s46, [#allocation5], 128, 128, 8
    $region17: #{tabnet_forward.1} parent=1 // pred_fallthru
      _
    // Predicated region
    $region18: #{tabnet_forward.1} parent=1 // pred_check
      _
    $region19: #{tabnet_forward.1} parent=1 // pred_check_branch
      %53 = sbr.rel (0) target = $region21
    $region20: #{tabnet_forward.1} parent=1 // pred_region
      %55 = vsyncadd [#allocation8], 0
      %s56 = sshll.u32 %s4, 4
      %s57 = int_to_ptr.hbm [resolvable:$true] %s56
      %s58 = sshll.u32 [#allocation7], 4
      %s59 = int_to_ptr.vmem [resolvable:$true] %s58
      %64 = dma.hbm_to_vmem [thread:$0]  %s57, 8192, %s59, [#allocation8], 128, 128, 8
    $region21: #{tabnet_forward.1} parent=1 // pred_fallthru
      _
    // Predicated region
    $region22: #{tabnet_forward.1} parent=1 // pred_check
      _
    $region23: #{tabnet_forward.1} parent=1 // pred_check_branch
      %66 = sbr.rel (0) target = $region25
    $region24: #{tabnet_forward.1} parent=1 // pred_region
      _
    $region25: #{tabnet_forward.1} parent=1 // pred_fallthru
      _
    // Predicated region
    $region26: #{tabnet_forward.1} parent=1 // pred_check
      _
    $region27: #{tabnet_forward.1} parent=1 // pred_check_branch
      %68 = sbr.rel (0) target = $region29
    $region28: #{tabnet_forward.1} parent=1 // pred_region
      _
    $region29: #{tabnet_forward.1} parent=1 // pred_fallthru
      _
    // Predicated region
    $region30: #{tabnet_forward.1} parent=1 // pred_check
      _
    $region31: #{tabnet_forward.1} parent=1 // pred_check_branch
      %70 = sbr.rel (0) target = $region33
    $region32: #{tabnet_forward.1} parent=1 // pred_region
      %72 = dma.done [#allocation3], 128
    $region33: #{tabnet_forward.1} parent=1 // pred_fallthru
      _
    // Predicated region
    $region34: #{tabnet_forward.1} parent=1 // pred_check
      _
    $region35: #{tabnet_forward.1} parent=1 // pred_check_branch
      %74 = sbr.rel (0) target = $region37
    $region36: #{tabnet_forward.1} parent=1 // pred_region
      %76 = dma.done [#allocation5], 256
    $region37: #{tabnet_forward.1} parent=1 // pred_fallthru
      _
    // Predicated region
    $region38: #{tabnet_forward.1} parent=1 // pred_check
      _
    $region39: #{tabnet_forward.1} parent=1 // pred_check_branch
      %78 = sbr.rel (0) target = $region41
    $region40: #{tabnet_forward.1} parent=1 // pred_region
      %80 = dma.done [#allocation5], 512
    $region41: #{tabnet_forward.1} parent=1 // pred_fallthru
      _
    // Predicated region
    $region42: #{tabnet_forward.1} parent=1 // pred_check
      _
    $region43: #{tabnet_forward.1} parent=1 // pred_check_branch
      %82 = sbr.rel (0) target = $region45
    $region44: #{tabnet_forward.1} parent=1 // pred_region
      %84 = dma.done [#allocation8], 8192
    $region45: #{tabnet_forward.1} parent=1 // pred_fallthru
      _
    %v86 = vld [vmem:[%s0] sm:$0xff]
    %v87 = vld [vmem:[#allocation2] sm:$0x1]
    %v88 = vperm.slane %v87, 0
    %v89 = vmul.f32 %v86, %v88
    %v90 = vld [vmem:[#allocation2 + $0x1] sm:$0x1]
    %v91 = vperm.slane %v90, 0
    %v92 = vadd.f32 %v89, %v91
    %v93 = vlaneseq
    %v94 = vand.u32 %v93, 127
    %vm95 = vcmp.eq.s32.totalorder %v94, 127
    %v96 = vsel %vm95, 1, 0
    %v97 = vcvt.s32.f32 %v96
    %vm98 = vcmp.eq.s32.totalorder %v94, 4
    %v99 = vsel %vm98, 1, 0
    %v100 = vcvt.s32.f32 %v99
    %v101 = vld [vmem:[#allocation6] sm:$0xff]
    %v102 = vld [vmem:[#allocation6 + $0x8] sm:$0xff]
    %v103 = vld [vmem:[#allocation4] ss:$8 sm:$0x3]
    %v104 = vpack.c.bf16 %v92, %v92
    %v106 = vperm.slane %v103, 0
    %v107 = vperm.slane %v103, 1
    %v112 = vunpack.c.l.b16 %v101
    %v113 = vunpack.c.h.b16 %v101
    %v114 = vunpack.c.l.b16 %v102
    %v115 = vunpack.c.h.b16 %v102
    %v116 = vpack.c.b16 %v114, %v112
    %v117 = vpack.c.b16 %v115, %v113
    %vm120 = vcmask 130048
    %v122 = vsel %vm120, %v104, 0
    %124 = vmatpush.bf16.msra.mxu0 0
    %125 = vmatpush.bf16.msra.mxu0 0
    %126 = vmatpush.bf16.msra.mxu0 0
    %127 = vmatpush.bf16.msra.mxu0 0
    %128 = vmatpush.bf16.msra.mxu0 0
    %129 = vmatpush.bf16.msra.mxu0 0
    %130 = vmatpush.bf16.msra.mxu0 0
    %131 = vmatpush.bf16.msra.mxu0 %v116
    %132 = vmatmul.bf16.gmra.mxu0 %v122
    %v133 = vpop.f32.mrf.mxu0
    %v134 = vadd.f32 %v106, %v133
    %v135 = vpop.f32.mrf.mxu0
    %136 = vdwg.mxu0
    %137 = vmatpush.bf16.msra.mxu0 0
    %138 = vmatpush.bf16.msra.mxu0 0
    %139 = vmatpush.bf16.msra.mxu0 0
    %140 = vmatpush.bf16.msra.mxu0 0
    %141 = vmatpush.bf16.msra.mxu0 0
    %142 = vmatpush.bf16.msra.mxu0 0
    %143 = vmatpush.bf16.msra.mxu0 0
    %144 = vmatpush.bf16.msra.mxu0 %v117
    %145 = vmatmul.bf16.gmra.mxu0 %v122
    %v146 = vpop.f32.mrf.mxu0
    %v147 = vadd.f32 %v107, %v146
    %v148 = vpop.f32.mrf.mxu0
    %149 = vdwg.mxu0
    %v150 = vxor.u32 %v147, 2147483648
    %v151 = vmul.f32 %v150, 1.442695
    %v152 = vpow.pop %v151
    %v153 = vadd.f32 %v152, 1.0
    %v154 = vrcp.pop %v153
    %v155 = vmul.f32 %v153, %v154
    %v156 = vsub.f32 1.0, %v155
    %v157 = vmul.f32 %v154, %v156
    %v158 = vadd.f32 %v154, %v157
    %vm159 = vweird.f32 %v153
    %vm160 = vweird.f32 %v154
    %vm161 = vmor %vm159, %vm160
    %v162 = vsel %vm161, %v154, %v158
    %v163 = vand.u32 2147483647, %v153
    %vm164 = vcmp.eq.f32.partialorder %v163, 8.507059e+37
    %v165 = vand.u32 %v153, 2147483648
    %v166 = vor.u32 1.1754944e-38, %v165
    %v167 = vsel %vm164, %v166, %v162
    %v168 = vmul.f32 1.0, %v167
    %v169 = vmul.f32 %v134, %v168
    %v170 = vld [vmem:[#allocation7] sm:$0xff]
    %v171 = vld [vmem:[#allocation7 + $0x8] sm:$0xff]
    %v172 = vld [vmem:[#allocation7 + $0x10] sm:$0xff]
    %v173 = vld [vmem:[#allocation7 + $0x18] sm:$0xff]
    %v174 = vld [vmem:[#allocation7 + $0x20] sm:$0xff]
    %v175 = vld [vmem:[#allocation7 + $0x28] sm:$0xff]
    %v176 = vld [vmem:[#allocation7 + $0x30] sm:$0xff]
    %v177 = vld [vmem:[#allocation7 + $0x38] sm:$0xff]
    %v178 = vld [vmem:[#allocation7 + $0x40] sm:$0xff]
    %v179 = vld [vmem:[#allocation7 + $0x48] sm:$0xff]
    %v180 = vld [vmem:[#allocation7 + $0x50] sm:$0xff]
    %v181 = vld [vmem:[#allocation7 + $0x58] sm:$0xff]
    %v182 = vld [vmem:[#allocation7 + $0x60] sm:$0xff]
    %v183 = vld [vmem:[#allocation7 + $0x68] sm:$0xff]
    %v184 = vld [vmem:[#allocation7 + $0x70] sm:$0xff]
    %v185 = vld [vmem:[#allocation7 + $0x78] sm:$0xff]
    %s186 = scalar_lea.vmem [#allocation4], 1
    %v187 = vld [vmem:[%s186] ss:$8 sm:$0x3]
    %v188 = vpack.c.bf16 %v169, %v169
    %v190 = vperm.slane %v187, 0
    %v191 = vperm.slane %v187, 1
    %v210 = vunpack.c.l.b16 %v170
    %v211 = vunpack.c.h.b16 %v170
    %v212 = vunpack.c.l.b16 %v171
    %v213 = vunpack.c.h.b16 %v171
    %v214 = vunpack.c.l.b16 %v172
    %v215 = vunpack.c.h.b16 %v172
    %v216 = vunpack.c.l.b16 %v173
    %v217 = vunpack.c.h.b16 %v173
    %v218 = vunpack.c.l.b16 %v174
    %v219 = vunpack.c.h.b16 %v174
    %v220 = vunpack.c.l.b16 %v175
    %v221 = vunpack.c.h.b16 %v175
    %v222 = vunpack.c.l.b16 %v176
    %v223 = vunpack.c.h.b16 %v176
    %v224 = vunpack.c.l.b16 %v177
    %v225 = vunpack.c.h.b16 %v177
    %v226 = vunpack.c.l.b16 %v178
    %v227 = vunpack.c.h.b16 %v178
    %v228 = vunpack.c.l.b16 %v179
    %v229 = vunpack.c.h.b16 %v179
    %v230 = vunpack.c.l.b16 %v180
    %v231 = vunpack.c.h.b16 %v180
    %v232 = vunpack.c.l.b16 %v181
    %v233 = vunpack.c.h.b16 %v181
    %v234 = vunpack.c.l.b16 %v182
    %v235 = vunpack.c.h.b16 %v182
    %v236 = vunpack.c.l.b16 %v183
    %v237 = vunpack.c.h.b16 %v183
    %v238 = vunpack.c.l.b16 %v184
    %v239 = vunpack.c.h.b16 %v184
    %v240 = vunpack.c.l.b16 %v185
    %v241 = vunpack.c.h.b16 %v185
    %v242 = vpack.c.b16 %v212, %v210
    %v243 = vpack.c.b16 %v213, %v211
    %v244 = vpack.c.b16 %v216, %v214
    %v245 = vpack.c.b16 %v217, %v215
    %v246 = vpack.c.b16 %v220, %v218
    %v247 = vpack.c.b16 %v221, %v219
    %v248 = vpack.c.b16 %v224, %v222
    %v249 = vpack.c.b16 %v225, %v223
    %v250 = vpack.c.b16 %v228, %v226
    %v251 = vpack.c.b16 %v229, %v227
    %v252 = vpack.c.b16 %v232, %v230
    %v253 = vpack.c.b16 %v233, %v231
    %v254 = vpack.c.b16 %v236, %v234
    %v255 = vpack.c.b16 %v237, %v235
    %v256 = vpack.c.b16 %v240, %v238
    %v257 = vpack.c.b16 %v241, %v239
    %274 = vmatpush.bf16.msra.mxu0 %v256
    %275 = vmatpush.bf16.msra.mxu0 %v254
    %276 = vmatpush.bf16.msra.mxu0 %v252
    %277 = vmatpush.bf16.msra.mxu0 %v250
    %278 = vmatpush.bf16.msra.mxu0 %v248
    %279 = vmatpush.bf16.msra.mxu0 %v246
    %280 = vmatpush.bf16.msra.mxu0 %v244
    %281 = vmatpush.bf16.msra.mxu0 %v242
    %282 = vmatmul.bf16.gmra.mxu0 %v188
    %v283 = vpop.f32.mrf.mxu0
    %v284 = vadd.f32 %v190, %v283
    %v285 = vpop.f32.mrf.mxu0
    %286 = vdwg.mxu0
    %287 = vmatpush.bf16.msra.mxu0 %v257
    %288 = vmatpush.bf16.msra.mxu0 %v255
    %289 = vmatpush.bf16.msra.mxu0 %v253
    %290 = vmatpush.bf16.msra.mxu0 %v251
    %291 = vmatpush.bf16.msra.mxu0 %v249
    %292 = vmatpush.bf16.msra.mxu0 %v247
    %293 = vmatpush.bf16.msra.mxu0 %v245
    %294 = vmatpush.bf16.msra.mxu0 %v243
    %295 = vmatmul.bf16.gmra.mxu0 %v188
    %v296 = vpop.f32.mrf.mxu0
    %v297 = vadd.f32 %v191, %v296
    %v298 = vpop.f32.mrf.mxu0
    %299 = vdwg.mxu0
    %v300 = vxor.u32 %v297, 2147483648
    %v301 = vmul.f32 %v300, 1.442695
    %v302 = vpow.pop %v301
    %v303 = vadd.f32 %v302, 1.0
    %v304 = vrcp.pop %v303
    %v305 = vmul.f32 %v303, %v304
    %v306 = vsub.f32 1.0, %v305
    %v307 = vmul.f32 %v304, %v306
    %v308 = vadd.f32 %v304, %v307
    %vm309 = vweird.f32 %v303
    %vm310 = vweird.f32 %v304
    %vm311 = vmor %vm309, %vm310
    %v312 = vsel %vm311, %v304, %v308
    %v313 = vand.u32 2147483647, %v303
    %vm314 = vcmp.eq.f32.partialorder %v313, 8.507059e+37
    %v315 = vand.u32 %v303, 2147483648
    %v316 = vor.u32 1.1754944e-38, %v315
    %v317 = vsel %vm314, %v316, %v312
    %v318 = vmul.f32 1.0, %v317
    %v319 = vmul.f32 %v284, %v318
    %v320 = vadd.f32 %v169, %v319
    %v321 = vmul.f32 %v320, 0.70710677
    %s322 = scalar_lea.vmem [#allocation7], 128
    %v323 = vld [vmem:[%s322] sm:$0xff]
    %v324 = vld [vmem:[%s322 + $0x8] sm:$0xff]
    %v325 = vld [vmem:[%s322 + $0x10] sm:$0xff]
    %v326 = vld [vmem:[%s322 + $0x18] sm:$0xff]
    %v327 = vld [vmem:[%s322 + $0x20] sm:$0xff]
    %v328 = vld [vmem:[%s322 + $0x28] sm:$0xff]
    %v329 = vld [vmem:[%s322 + $0x30] sm:$0xff]
    %v330 = vld [vmem:[%s322 + $0x38] sm:$0xff]
    %v331 = vld [vmem:[%s322 + $0x40] sm:$0xff]
    %v332 = vld [vmem:[%s322 + $0x48] sm:$0xff]
    %v333 = vld [vmem:[%s322 + $0x50] sm:$0xff]
    %v334 = vld [vmem:[%s322 + $0x58] sm:$0xff]
    %v335 = vld [vmem:[%s322 + $0x60] sm:$0xff]
    %v336 = vld [vmem:[%s322 + $0x68] sm:$0xff]
    %v337 = vld [vmem:[%s322 + $0x70] sm:$0xff]
    %v338 = vld [vmem:[%s322 + $0x78] sm:$0xff]
    %s339 = scalar_lea.vmem [#allocation4], 2
    %v340 = vld [vmem:[%s339] ss:$8 sm:$0x3]
    %v341 = vpack.c.bf16 %v321, %v321
    %v343 = vperm.slane %v340, 0
    %v344 = vperm.slane %v340, 1
    %v363 = vunpack.c.l.b16 %v323
    %v364 = vunpack.c.h.b16 %v323
    %v365 = vunpack.c.l.b16 %v324
    %v366 = vunpack.c.h.b16 %v324
    %v367 = vunpack.c.l.b16 %v325
    %v368 = vunpack.c.h.b16 %v325
    %v369 = vunpack.c.l.b16 %v326
    %v370 = vunpack.c.h.b16 %v326
    %v371 = vunpack.c.l.b16 %v327
    %v372 = vunpack.c.h.b16 %v327
    %v373 = vunpack.c.l.b16 %v328
    %v374 = vunpack.c.h.b16 %v328
    %v375 = vunpack.c.l.b16 %v329
    %v376 = vunpack.c.h.b16 %v329
    %v377 = vunpack.c.l.b16 %v330
    %v378 = vunpack.c.h.b16 %v330
    %v379 = vunpack.c.l.b16 %v331
    %v380 = vunpack.c.h.b16 %v331
    %v381 = vunpack.c.l.b16 %v332
    %v382 = vunpack.c.h.b16 %v332
    %v383 = vunpack.c.l.b16 %v333
    %v384 = vunpack.c.h.b16 %v333
    %v385 = vunpack.c.l.b16 %v334
    %v386 = vunpack.c.h.b16 %v334
    %v387 = vunpack.c.l.b16 %v335
    %v388 = vunpack.c.h.b16 %v335
    %v389 = vunpack.c.l.b16 %v336
    %v390 = vunpack.c.h.b16 %v336
    %v391 = vunpack.c.l.b16 %v337
    %v392 = vunpack.c.h.b16 %v337
    %v393 = vunpack.c.l.b16 %v338
    %v394 = vunpack.c.h.b16 %v338
    %v395 = vpack.c.b16 %v365, %v363
    %v396 = vpack.c.b16 %v366, %v364
    %v397 = vpack.c.b16 %v369, %v367
    %v398 = vpack.c.b16 %v370, %v368
    %v399 = vpack.c.b16 %v373, %v371
    %v400 = vpack.c.b16 %v374, %v372
    %v401 = vpack.c.b16 %v377, %v375
    %v402 = vpack.c.b16 %v378, %v376
    %v403 = vpack.c.b16 %v381, %v379
    %v404 = vpack.c.b16 %v382, %v380
    %v405 = vpack.c.b16 %v385, %v383
    %v406 = vpack.c.b16 %v386, %v384
    %v407 = vpack.c.b16 %v389, %v387
    %v408 = vpack.c.b16 %v390, %v388
    %v409 = vpack.c.b16 %v393, %v391
    %v410 = vpack.c.b16 %v394, %v392
    %427 = vmatpush.bf16.msra.mxu0 %v409
    %428 = vmatpush.bf16.msra.mxu0 %v407
    %429 = vmatpush.bf16.msra.mxu0 %v405
    %430 = vmatpush.bf16.msra.mxu0 %v403
    %431 = vmatpush.bf16.msra.mxu0 %v401
    %432 = vmatpush.bf16.msra.mxu0 %v399
    %433 = vmatpush.bf16.msra.mxu0 %v397
    %434 = vmatpush.bf16.msra.mxu0 %v395
    %435 = vmatmul.bf16.gmra.mxu0 %v341
    %v436 = vpop.f32.mrf.mxu0
    %v437 = vadd.f32 %v343, %v436
    %v438 = vpop.f32.mrf.mxu0
    %439 = vdwg.mxu0
    %440 = vmatpush.bf16.msra.mxu0 %v410
    %441 = vmatpush.bf16.msra.mxu0 %v408
    %442 = vmatpush.bf16.msra.mxu0 %v406
    %443 = vmatpush.bf16.msra.mxu0 %v404
    %444 = vmatpush.bf16.msra.mxu0 %v402
    %445 = vmatpush.bf16.msra.mxu0 %v400
    %446 = vmatpush.bf16.msra.mxu0 %v398
    %447 = vmatpush.bf16.msra.mxu0 %v396
    %448 = vmatmul.bf16.gmra.mxu0 %v341
    %v449 = vpop.f32.mrf.mxu0
    %v450 = vadd.f32 %v344, %v449
    %v451 = vpop.f32.mrf.mxu0
    %452 = vdwg.mxu0
    %v453 = vxor.u32 %v450, 2147483648
    %v454 = vmul.f32 %v453, 1.442695
    %v455 = vpow.pop %v454
    %v456 = vadd.f32 %v455, 1.0
    %v457 = vrcp.pop %v456
    %v458 = vmul.f32 %v456, %v457
    %v459 = vsub.f32 1.0, %v458
    %v460 = vmul.f32 %v457, %v459
    %v461 = vadd.f32 %v457, %v460
    %vm462 = vweird.f32 %v456
    %vm463 = vweird.f32 %v457
    %vm464 = vmor %vm462, %vm463
    %v465 = vsel %vm464, %v457, %v461
    %v466 = vand.u32 2147483647, %v456
    %vm467 = vcmp.eq.f32.partialorder %v466, 8.507059e+37
    %v468 = vand.u32 %v456, 2147483648
    %v469 = vor.u32 1.1754944e-38, %v468
    %v470 = vsel %vm467, %v469, %v465
    %v471 = vmul.f32 1.0, %v470
    %v472 = vmul.f32 %v437, %v471
    %v473 = vadd.f32 %v321, %v472
    %v474 = vmul.f32 %v473, 0.70710677
    %v475 = vadd.f32 %v474, %v97
    %v476 = vpack.c.bf16 %v475, %v475
    %v477 = vld [vmem:[%s5] sm:$0xf]
    %v478 = vld [vmem:[%s5 + $0x4] sm:$0xf]
    %v479 = vld [vmem:[%s5 + $0x8] sm:$0xf]
    %v480 = vld [vmem:[%s5 + $0xc] sm:$0xf]
    %v481 = vld [vmem:[%s5 + $0x10] sm:$0xf]
    %v482 = vld [vmem:[%s5 + $0x14] sm:$0xf]
    %v483 = vld [vmem:[%s5 + $0x18] sm:$0xf]
    %v484 = vld [vmem:[%s5 + $0x1c] sm:$0xf]
    %v485 = vld [vmem:[%s5 + $0x20] sm:$0xf]
    %v486 = vld [vmem:[%s5 + $0x24] sm:$0xf]
    %v487 = vld [vmem:[%s5 + $0x28] sm:$0xf]
    %v488 = vld [vmem:[%s5 + $0x2c] sm:$0xf]
    %v489 = vld [vmem:[%s5 + $0x30] sm:$0xf]
    %v490 = vld [vmem:[%s5 + $0x34] sm:$0xf]
    %v491 = vld [vmem:[%s5 + $0x38] sm:$0xf]
    %v492 = vld [vmem:[%s5 + $0x3c] sm:$0xf]
    %v509 = vunpack.c.l.b16 %v477
    %v510 = vunpack.c.l.b16 %v478
    %v511 = vunpack.c.l.b16 %v479
    %v512 = vunpack.c.l.b16 %v480
    %v513 = vunpack.c.l.b16 %v481
    %v514 = vunpack.c.l.b16 %v482
    %v515 = vunpack.c.l.b16 %v483
    %v516 = vunpack.c.l.b16 %v484
    %v517 = vunpack.c.l.b16 %v485
    %v518 = vunpack.c.l.b16 %v486
    %v519 = vunpack.c.l.b16 %v487
    %v520 = vunpack.c.l.b16 %v488
    %v521 = vunpack.c.l.b16 %v489
    %v522 = vunpack.c.l.b16 %v490
    %v523 = vunpack.c.l.b16 %v491
    %v524 = vunpack.c.l.b16 %v492
    %v525 = vpack.c.b16 %v510, %v509
    %v526 = vpack.c.b16 %v512, %v511
    %v527 = vpack.c.b16 %v514, %v513
    %v528 = vpack.c.b16 %v516, %v515
    %v529 = vpack.c.b16 %v518, %v517
    %v530 = vpack.c.b16 %v520, %v519
    %v531 = vpack.c.b16 %v522, %v521
    %v532 = vpack.c.b16 %v524, %v523
    %541 = vmatpush.bf16.msra.mxu0 %v532
    %542 = vmatpush.bf16.msra.mxu0 %v531
    %543 = vmatpush.bf16.msra.mxu0 %v530
    %544 = vmatpush.bf16.msra.mxu0 %v529
    %545 = vmatpush.bf16.msra.mxu0 %v528
    %546 = vmatpush.bf16.msra.mxu0 %v527
    %547 = vmatpush.bf16.msra.mxu0 %v526
    %548 = vmatpush.bf16.msra.mxu0 %v525
    %549 = vmatmul.bf16.gmra.mxu0 %v476
    %v550 = vpop.f32.mrf.mxu0
    %v551 = vadd.f32 0.0, %v550
    %v552 = vpop.f32.mrf.mxu0
    %553 = vdwg.mxu0
    %v554 = vsel %vm120, %v551, -inf
    %555 = vmax.xlane.f32.xlu0 %v554
    %v556 = vpop.xlane.xlu0 %555
    %v557 = vsub.f32 %v551, %v556
    %v558 = vmul.f32 %v557, 0.5
    %v559 = vsub.f32 %v558, -1.0
    %v560 = vmax.f32 %v559, 0.0
    %v561 = vmul.f32 %v560, %v560
    %v562 = vsel %vm120, %v561, 0.0
    %563 = vadd.xlane.f32.xlu0 %v562
    %v564 = vpop.xlane.xlu0 %563
    %v565 = vsub.f32 %v564, 1.0
    %v566 = vsel %vm120, %v560, 0.0
    %567 = vadd.xlane.f32.xlu0 %v566
    %v568 = vpop.xlane.xlu0 %567
    %v569 = vmul.f32 %v568, 2.0
    %v570 = vrcp.pop %v569
    %v571 = vmul.f32 %v569, %v570
    %v572 = vsub.f32 1.0, %v571
    %v573 = vmul.f32 %v570, %v572
    %v574 = vadd.f32 %v570, %v573
    %vm575 = vweird.f32 %v569
    %vm576 = vweird.f32 %v570
    %vm577 = vmor %vm575, %vm576
    %v578 = vsel %vm577, %v570, %v574
    %v579 = vand.u32 2147483647, %v569
    %vm580 = vcmp.eq.f32.partialorder %v579, 8.507059e+37
    %v581 = vand.u32 %v569, 2147483648
    %v582 = vor.u32 1.1754944e-38, %v581
    %v583 = vsel %vm580, %v582, %v578
    %v584 = vmul.f32 %v565, %v583
    %v585 = vadd.f32 %v584, -1.0
    %v586 = vmax.f32 %v585, -1.0
    %v587 = vmin.f32 %v586, 0.0
    %v588 = vsub.f32 %v558, %v587
    %v589 = vmax.f32 %v588, 0.0
    %v590 = vmul.f32 %v589, %v589
    %v591 = vsel %vm120, %v590, 0.0
    %592 = vadd.xlane.f32.xlu0 %v591
    %v593 = vpop.xlane.xlu0 %592
    %v594 = vsub.f32 %v593, 1.0
    %v595 = vsel %vm120, %v589, 0.0
    %596 = vadd.xlane.f32.xlu0 %v595
    %v597 = vpop.xlane.xlu0 %596
    %v598 = vmul.f32 %v597, 2.0
    %v599 = vrcp.pop %v598
    %v600 = vmul.f32 %v598, %v599
    %v601 = vsub.f32 1.0, %v600
    %v602 = vmul.f32 %v599, %v601
    %v603 = vadd.f32 %v599, %v602
    %vm604 = vweird.f32 %v598
    %vm605 = vweird.f32 %v599
    %vm606 = vmor %vm604, %vm605
    %v607 = vsel %vm606, %v599, %v603
    %v608 = vand.u32 2147483647, %v598
    %vm609 = vcmp.eq.f32.partialorder %v608, 8.507059e+37
    %v610 = vand.u32 %v598, 2147483648
    %v611 = vor.u32 1.1754944e-38, %v610
    %v612 = vsel %vm609, %v611, %v607
    %v613 = vmul.f32 %v594, %v612
    %v614 = vadd.f32 %v587, %v613
    %v615 = vmax.f32 %v614, -1.0
    %v616 = vmin.f32 %v615, 0.0
    %v617 = vsub.f32 %v558, %v616
    %v618 = vmax.f32 %v617, 0.0
    %v619 = vmul.f32 %v618, %v618
    %v620 = vsel %vm120, %v619, 0.0
    %621 = vadd.xlane.f32.xlu0 %v620
    %v622 = vpop.xlane.xlu0 %621
    %v623 = vsub.f32 %v622, 1.0
    %v624 = vsel %vm120, %v618, 0.0
    %625 = vadd.xlane.f32.xlu0 %v624
    %v626 = vpop.xlane.xlu0 %625
    %v627 = vmul.f32 %v626, 2.0
    %v628 = vrcp.pop %v627
    %v629 = vmul.f32 %v627, %v628
    %v630 = vsub.f32 1.0, %v629
    %v631 = vmul.f32 %v628, %v630
    %v632 = vadd.f32 %v628, %v631
    %vm633 = vweird.f32 %v627
    %vm634 = vweird.f32 %v628
    %vm635 = vmor %vm633, %vm634
    %v636 = vsel %vm635, %v628, %v632
    %v637 = vand.u32 2147483647, %v627
    %vm638 = vcmp.eq.f32.partialorder %v637, 8.507059e+37
    %v639 = vand.u32 %v627, 2147483648
    %v640 = vor.u32 1.1754944e-38, %v639
    %v641 = vsel %vm638, %v640, %v636
    %v642 = vmul.f32 %v623, %v641
    %v643 = vadd.f32 %v616, %v642
    %v644 = vmax.f32 %v643, -1.0
    %v645 = vmin.f32 %v644, 0.0
    %v646 = vsub.f32 %v558, %v645
    %v647 = vmax.f32 %v646, 0.0
    %v648 = vmul.f32 %v647, %v647
    %v649 = vsel %vm120, %v648, 0.0
    %650 = vadd.xlane.f32.xlu0 %v649
    %v651 = vpop.xlane.xlu0 %650
    %v652 = vsub.f32 %v651, 1.0
    %v653 = vsel %vm120, %v647, 0.0
    %654 = vadd.xlane.f32.xlu0 %v653
    %v655 = vpop.xlane.xlu0 %654
    %v656 = vmul.f32 %v655, 2.0
    %v657 = vrcp.pop %v656
    %v658 = vmul.f32 %v656, %v657
    %v659 = vsub.f32 1.0, %v658
    %v660 = vmul.f32 %v657, %v659
    %v661 = vadd.f32 %v657, %v660
    %vm662 = vweird.f32 %v656
    %vm663 = vweird.f32 %v657
    %vm664 = vmor %vm662, %vm663
    %v665 = vsel %vm664, %v657, %v661
    %v666 = vand.u32 2147483647, %v656
    %vm667 = vcmp.eq.f32.partialorder %v666, 8.507059e+37
    %v668 = vand.u32 %v656, 2147483648
    %v669 = vor.u32 1.1754944e-38, %v668
    %v670 = vsel %vm667, %v669, %v665
    %v671 = vmul.f32 %v652, %v670
    %v672 = vadd.f32 %v645, %v671
    %v673 = vmax.f32 %v672, -1.0
    %v674 = vmin.f32 %v673, 0.0
    %v675 = vsub.f32 %v558, %v674
    %v676 = vmax.f32 %v675, 0.0
    %v677 = vmul.f32 %v676, %v676
    %v678 = vsel %vm120, %v677, 0.0
    %679 = vadd.xlane.f32.xlu0 %v678
    %v680 = vpop.xlane.xlu0 %679
    %v681 = vsub.f32 %v680, 1.0
    %v682 = vsel %vm120, %v676, 0.0
    %683 = vadd.xlane.f32.xlu0 %v682
    %v684 = vpop.xlane.xlu0 %683
    %v685 = vmul.f32 %v684, 2.0
    %v686 = vrcp.pop %v685
    %v687 = vmul.f32 %v685, %v686
    %v688 = vsub.f32 1.0, %v687
    %v689 = vmul.f32 %v686, %v688
    %v690 = vadd.f32 %v686, %v689
    %vm691 = vweird.f32 %v685
    %vm692 = vweird.f32 %v686
    %vm693 = vmor %vm691, %vm692
    %v694 = vsel %vm693, %v686, %v690
    %v695 = vand.u32 2147483647, %v685
    %vm696 = vcmp.eq.f32.partialorder %v695, 8.507059e+37
    %v697 = vand.u32 %v685, 2147483648
    %v698 = vor.u32 1.1754944e-38, %v697
    %v699 = vsel %vm696, %v698, %v694
    %v700 = vmul.f32 %v681, %v699
    %v701 = vadd.f32 %v674, %v700
    %v702 = vmax.f32 %v701, -1.0
    %v703 = vmin.f32 %v702, 0.0
    %v704 = vsub.f32 %v558, %v703
    %v705 = vmax.f32 %v704, 0.0
    %v706 = vmul.f32 %v705, %v705
    %v707 = vsel %vm120, %v706, 0.0
    %708 = vadd.xlane.f32.xlu0 %v707
    %v709 = vpop.xlane.xlu0 %708
    %v710 = vsub.f32 %v709, 1.0
    %v711 = vsel %vm120, %v705, 0.0
    %712 = vadd.xlane.f32.xlu0 %v711
    %v713 = vpop.xlane.xlu0 %712
    %v714 = vmul.f32 %v713, 2.0
    %v715 = vrcp.pop %v714
    %v716 = vmul.f32 %v714, %v715
    %v717 = vsub.f32 1.0, %v716
    %v718 = vmul.f32 %v715, %v717
    %v719 = vadd.f32 %v715, %v718
    %vm720 = vweird.f32 %v714
    %vm721 = vweird.f32 %v715
    %vm722 = vmor %vm720, %vm721
    %v723 = vsel %vm722, %v715, %v719
    %v724 = vand.u32 2147483647, %v714
    %vm725 = vcmp.eq.f32.partialorder %v724, 8.507059e+37
    %v726 = vand.u32 %v714, 2147483648
    %v727 = vor.u32 1.1754944e-38, %v726
    %v728 = vsel %vm725, %v727, %v723
    %v729 = vmul.f32 %v710, %v728
    %v730 = vadd.f32 %v703, %v729
    %v731 = vmax.f32 %v730, -1.0
    %v732 = vmin.f32 %v731, 0.0
    %v733 = vsub.f32 %v558, %v732
    %v734 = vmax.f32 %v733, 0.0
    %v735 = vmul.f32 %v734, %v734
    %v736 = vsel %vm120, %v735, 0.0
    %737 = vadd.xlane.f32.xlu0 %v736
    %v738 = vpop.xlane.xlu0 %737
    %v739 = vsub.f32 %v738, 1.0
    %v740 = vsel %vm120, %v734, 0.0
    %741 = vadd.xlane.f32.xlu0 %v740
    %v742 = vpop.xlane.xlu0 %741
    %v743 = vmul.f32 %v742, 2.0
    %v744 = vrcp.pop %v743
    %v745 = vmul.f32 %v743, %v744
    %v746 = vsub.f32 1.0, %v745
    %v747 = vmul.f32 %v744, %v746
    %v748 = vadd.f32 %v744, %v747
    %vm749 = vweird.f32 %v743
    %vm750 = vweird.f32 %v744
    %vm751 = vmor %vm749, %vm750
    %v752 = vsel %vm751, %v744, %v748
    %v753 = vand.u32 2147483647, %v743
    %vm754 = vcmp.eq.f32.partialorder %v753, 8.507059e+37
    %v755 = vand.u32 %v743, 2147483648
    %v756 = vor.u32 1.1754944e-38, %v755
    %v757 = vsel %vm754, %v756, %v752
    %v758 = vmul.f32 %v739, %v757
    %v759 = vadd.f32 %v732, %v758
    %v760 = vmax.f32 %v759, -1.0
    %v761 = vmin.f32 %v760, 0.0
    %v762 = vsub.f32 %v558, %v761
    %v763 = vmax.f32 %v762, 0.0
    %v764 = vmul.f32 %v763, %v763
    %v765 = vsel %vm120, %v764, 0.0
    %766 = vadd.xlane.f32.xlu0 %v765
    %v767 = vpop.xlane.xlu0 %766
    %v768 = vsub.f32 %v767, 1.0
    %v769 = vsel %vm120, %v763, 0.0
    %770 = vadd.xlane.f32.xlu0 %v769
    %v771 = vpop.xlane.xlu0 %770
    %v772 = vmul.f32 %v771, 2.0
    %v773 = vrcp.pop %v772
    %v774 = vmul.f32 %v772, %v773
    %v775 = vsub.f32 1.0, %v774
    %v776 = vmul.f32 %v773, %v775
    %v777 = vadd.f32 %v773, %v776
    %vm778 = vweird.f32 %v772
    %vm779 = vweird.f32 %v773
    %vm780 = vmor %vm778, %vm779
    %v781 = vsel %vm780, %v773, %v777
    %v782 = vand.u32 2147483647, %v772
    %vm783 = vcmp.eq.f32.partialorder %v782, 8.507059e+37
    %v784 = vand.u32 %v772, 2147483648
    %v785 = vor.u32 1.1754944e-38, %v784
    %v786 = vsel %vm783, %v785, %v781
    %v787 = vmul.f32 %v768, %v786
    %v788 = vadd.f32 %v761, %v787
    %v789 = vmax.f32 %v788, -1.0
    %v790 = vmin.f32 %v789, 0.0
    %v791 = vsub.f32 %v558, %v790
    %v792 = vmax.f32 %v791, 0.0
    %v793 = vmul.f32 %v792, %v792
    %v794 = vadd.f32 %v793, 1e-15
    %v795 = vlog2.pop %v794
    %v796 = vmul.f32 %v795, 0.6931472
    %v797 = vmul.f32 %v793, %v796
    %v798 = vsel %vm120, %v797, 0.0
    %799 = vadd.xlane.f32.xlu0 %v798
    %v800 = vpop.xlane.xlu0 %799
    %v801 = vmul.f32 %v793, %v92
    %s802 = scalar_lea.vmem [#allocation6], 16
    %v803 = vld [vmem:[%s802] sm:$0xff]
    %v804 = vld [vmem:[%s802 + $0x8] sm:$0xff]
    %s805 = scalar_lea.vmem [#allocation4], 3
    %v806 = vld [vmem:[%s805] ss:$8 sm:$0x3]
    %v807 = vpack.c.bf16 %v801, %v801
    %v809 = vperm.slane %v806, 0
    %v810 = vperm.slane %v806, 1
    %v815 = vunpack.c.l.b16 %v803
    %v816 = vunpack.c.h.b16 %v803
    %v817 = vunpack.c.l.b16 %v804
    %v818 = vunpack.c.h.b16 %v804
    %v819 = vpack.c.b16 %v817, %v815
    %v820 = vpack.c.b16 %v818, %v816
    %v824 = vsel %vm120, %v807, 0
    %826 = vmatpush.bf16.msra.mxu0 0
    %827 = vmatpush.bf16.msra.mxu0 0
    %828 = vmatpush.bf16.msra.mxu0 0
    %829 = vmatpush.bf16.msra.mxu0 0
    %830 = vmatpush.bf16.msra.mxu0 0
    %831 = vmatpush.bf16.msra.mxu0 0
    %832 = vmatpush.bf16.msra.mxu0 0
    %833 = vmatpush.bf16.msra.mxu0 %v819
    %834 = vmatmul.bf16.gmra.mxu0 %v824
    %v835 = vpop.f32.mrf.mxu0
    %v836 = vadd.f32 %v809, %v835
    %v837 = vpop.f32.mrf.mxu0
    %838 = vdwg.mxu0
    %839 = vmatpush.bf16.msra.mxu0 0
    %840 = vmatpush.bf16.msra.mxu0 0
    %841 = vmatpush.bf16.msra.mxu0 0
    %842 = vmatpush.bf16.msra.mxu0 0
    %843 = vmatpush.bf16.msra.mxu0 0
    %844 = vmatpush.bf16.msra.mxu0 0
    %845 = vmatpush.bf16.msra.mxu0 0
    %846 = vmatpush.bf16.msra.mxu0 %v820
    %847 = vmatmul.bf16.gmra.mxu0 %v824
    %v848 = vpop.f32.mrf.mxu0
    %v849 = vadd.f32 %v810, %v848
    %v850 = vpop.f32.mrf.mxu0
    %851 = vdwg.mxu0
    %v852 = vxor.u32 %v849, 2147483648
    %v853 = vmul.f32 %v852, 1.442695
    %v854 = vpow.pop %v853
    %v855 = vadd.f32 %v854, 1.0
    %v856 = vrcp.pop %v855
    %v857 = vmul.f32 %v855, %v856
    %v858 = vsub.f32 1.0, %v857
    %v859 = vmul.f32 %v856, %v858
    %v860 = vadd.f32 %v856, %v859
    %vm861 = vweird.f32 %v855
    %vm862 = vweird.f32 %v856
    %vm863 = vmor %vm861, %vm862
    %v864 = vsel %vm863, %v856, %v860
    %v865 = vand.u32 2147483647, %v855
    %vm866 = vcmp.eq.f32.partialorder %v865, 8.507059e+37
    %v867 = vand.u32 %v855, 2147483648
    %v868 = vor.u32 1.1754944e-38, %v867
    %v869 = vsel %vm866, %v868, %v864
    %v870 = vmul.f32 1.0, %v869
    %v871 = vmul.f32 %v836, %v870
    %s872 = scalar_lea.vmem [#allocation7], 256
    %v873 = vld [vmem:[%s872] sm:$0xff]
    %v874 = vld [vmem:[%s872 + $0x8] sm:$0xff]
    %v875 = vld [vmem:[%s872 + $0x10] sm:$0xff]
    %v876 = vld [vmem:[%s872 + $0x18] sm:$0xff]
    %v877 = vld [vmem:[%s872 + $0x20] sm:$0xff]
    %v878 = vld [vmem:[%s872 + $0x28] sm:$0xff]
    %v879 = vld [vmem:[%s872 + $0x30] sm:$0xff]
    %v880 = vld [vmem:[%s872 + $0x38] sm:$0xff]
    %v881 = vld [vmem:[%s872 + $0x40] sm:$0xff]
    %v882 = vld [vmem:[%s872 + $0x48] sm:$0xff]
    %v883 = vld [vmem:[%s872 + $0x50] sm:$0xff]
    %v884 = vld [vmem:[%s872 + $0x58] sm:$0xff]
    %v885 = vld [vmem:[%s872 + $0x60] sm:$0xff]
    %v886 = vld [vmem:[%s872 + $0x68] sm:$0xff]
    %v887 = vld [vmem:[%s872 + $0x70] sm:$0xff]
    %v888 = vld [vmem:[%s872 + $0x78] sm:$0xff]
    %s889 = scalar_lea.vmem [#allocation4], 4
    %v890 = vld [vmem:[%s889] ss:$8 sm:$0x3]
    %v891 = vpack.c.bf16 %v871, %v871
    %v893 = vperm.slane %v890, 0
    %v894 = vperm.slane %v890, 1
    %v913 = vunpack.c.l.b16 %v873
    %v914 = vunpack.c.h.b16 %v873
    %v915 = vunpack.c.l.b16 %v874
    %v916 = vunpack.c.h.b16 %v874
    %v917 = vunpack.c.l.b16 %v875
    %v918 = vunpack.c.h.b16 %v875
    %v919 = vunpack.c.l.b16 %v876
    %v920 = vunpack.c.h.b16 %v876
    %v921 = vunpack.c.l.b16 %v877
    %v922 = vunpack.c.h.b16 %v877
    %v923 = vunpack.c.l.b16 %v878
    %v924 = vunpack.c.h.b16 %v878
    %v925 = vunpack.c.l.b16 %v879
    %v926 = vunpack.c.h.b16 %v879
    %v927 = vunpack.c.l.b16 %v880
    %v928 = vunpack.c.h.b16 %v880
    %v929 = vunpack.c.l.b16 %v881
    %v930 = vunpack.c.h.b16 %v881
    %v931 = vunpack.c.l.b16 %v882
    %v932 = vunpack.c.h.b16 %v882
    %v933 = vunpack.c.l.b16 %v883
    %v934 = vunpack.c.h.b16 %v883
    %v935 = vunpack.c.l.b16 %v884
    %v936 = vunpack.c.h.b16 %v884
    %v937 = vunpack.c.l.b16 %v885
    %v938 = vunpack.c.h.b16 %v885
    %v939 = vunpack.c.l.b16 %v886
    %v940 = vunpack.c.h.b16 %v886
    %v941 = vunpack.c.l.b16 %v887
    %v942 = vunpack.c.h.b16 %v887
    %v943 = vunpack.c.l.b16 %v888
    %v944 = vunpack.c.h.b16 %v888
    %v945 = vpack.c.b16 %v915, %v913
    %v946 = vpack.c.b16 %v916, %v914
    %v947 = vpack.c.b16 %v919, %v917
    %v948 = vpack.c.b16 %v920, %v918
    %v949 = vpack.c.b16 %v923, %v921
    %v950 = vpack.c.b16 %v924, %v922
    %v951 = vpack.c.b16 %v927, %v925
    %v952 = vpack.c.b16 %v928, %v926
    %v953 = vpack.c.b16 %v931, %v929
    %v954 = vpack.c.b16 %v932, %v930
    %v955 = vpack.c.b16 %v935, %v933
    %v956 = vpack.c.b16 %v936, %v934
    %v957 = vpack.c.b16 %v939, %v937
    %v958 = vpack.c.b16 %v940, %v938
    %v959 = vpack.c.b16 %v943, %v941
    %v960 = vpack.c.b16 %v944, %v942
    %977 = vmatpush.bf16.msra.mxu0 %v959
    %978 = vmatpush.bf16.msra.mxu0 %v957
    %979 = vmatpush.bf16.msra.mxu0 %v955
    %980 = vmatpush.bf16.msra.mxu0 %v953
    %981 = vmatpush.bf16.msra.mxu0 %v951
    %982 = vmatpush.bf16.msra.mxu0 %v949
    %983 = vmatpush.bf16.msra.mxu0 %v947
    %984 = vmatpush.bf16.msra.mxu0 %v945
    %985 = vmatmul.bf16.gmra.mxu0 %v891
    %v986 = vpop.f32.mrf.mxu0
    %v987 = vadd.f32 %v893, %v986
    %v988 = vpop.f32.mrf.mxu0
    %989 = vdwg.mxu0
    %990 = vmatpush.bf16.msra.mxu0 %v960
    %991 = vmatpush.bf16.msra.mxu0 %v958
    %992 = vmatpush.bf16.msra.mxu0 %v956
    %993 = vmatpush.bf16.msra.mxu0 %v954
    %994 = vmatpush.bf16.msra.mxu0 %v952
    %995 = vmatpush.bf16.msra.mxu0 %v950
    %996 = vmatpush.bf16.msra.mxu0 %v948
    %997 = vmatpush.bf16.msra.mxu0 %v946
    %998 = vmatmul.bf16.gmra.mxu0 %v891
    %v999 = vpop.f32.mrf.mxu0
    %v1000 = vadd.f32 %v894, %v999
    %v1001 = vpop.f32.mrf.mxu0
    %1002 = vdwg.mxu0
    %v1003 = vxor.u32 %v1000, 2147483648
    %v1004 = vmul.f32 %v1003, 1.442695
    %v1005 = vpow.pop %v1004
    %v1006 = vadd.f32 %v1005, 1.0
    %v1007 = vrcp.pop %v1006
    %v1008 = vmul.f32 %v1006, %v1007
    %v1009 = vsub.f32 1.0, %v1008
    %v1010 = vmul.f32 %v1007, %v1009
    %v1011 = vadd.f32 %v1007, %v1010
    %vm1012 = vweird.f32 %v1006
    %vm1013 = vweird.f32 %v1007
    %vm1014 = vmor %vm1012, %vm1013
    %v1015 = vsel %vm1014, %v1007, %v1011
    %v1016 = vand.u32 2147483647, %v1006
    %vm1017 = vcmp.eq.f32.partialorder %v1016, 8.507059e+37
    %v1018 = vand.u32 %v1006, 2147483648
    %v1019 = vor.u32 1.1754944e-38, %v1018
    %v1020 = vsel %vm1017, %v1019, %v1015
    %v1021 = vmul.f32 1.0, %v1020
    %v1022 = vmul.f32 %v987, %v1021
    %v1023 = vadd.f32 %v871, %v1022
    %v1024 = vmul.f32 %v1023, 0.70710677
    %s1025 = scalar_lea.vmem [#allocation7], 384
    %v1026 = vld [vmem:[%s1025] sm:$0xff]
    %v1027 = vld [vmem:[%s1025 + $0x8] sm:$0xff]
    %v1028 = vld [vmem:[%s1025 + $0x10] sm:$0xff]
    %v1029 = vld [vmem:[%s1025 + $0x18] sm:$0xff]
    %v1030 = vld [vmem:[%s1025 + $0x20] sm:$0xff]
    %v1031 = vld [vmem:[%s1025 + $0x28] sm:$0xff]
    %v1032 = vld [vmem:[%s1025 + $0x30] sm:$0xff]
    %v1033 = vld [vmem:[%s1025 + $0x38] sm:$0xff]
    %v1034 = vld [vmem:[%s1025 + $0x40] sm:$0xff]
    %v1035 = vld [vmem:[%s1025 + $0x48] sm:$0xff]
    %v1036 = vld [vmem:[%s1025 + $0x50] sm:$0xff]
    %v1037 = vld [vmem:[%s1025 + $0x58] sm:$0xff]
    %v1038 = vld [vmem:[%s1025 + $0x60] sm:$0xff]
    %v1039 = vld [vmem:[%s1025 + $0x68] sm:$0xff]
    %v1040 = vld [vmem:[%s1025 + $0x70] sm:$0xff]
    %v1041 = vld [vmem:[%s1025 + $0x78] sm:$0xff]
    %s1042 = scalar_lea.vmem [#allocation4], 5
    %v1043 = vld [vmem:[%s1042] ss:$8 sm:$0x3]
    %v1044 = vpack.c.bf16 %v1024, %v1024
    %v1046 = vperm.slane %v1043, 0
    %v1047 = vperm.slane %v1043, 1
    %v1066 = vunpack.c.l.b16 %v1026
    %v1067 = vunpack.c.h.b16 %v1026
    %v1068 = vunpack.c.l.b16 %v1027
    %v1069 = vunpack.c.h.b16 %v1027
    %v1070 = vunpack.c.l.b16 %v1028
    %v1071 = vunpack.c.h.b16 %v1028
    %v1072 = vunpack.c.l.b16 %v1029
    %v1073 = vunpack.c.h.b16 %v1029
    %v1074 = vunpack.c.l.b16 %v1030
    %v1075 = vunpack.c.h.b16 %v1030
    %v1076 = vunpack.c.l.b16 %v1031
    %v1077 = vunpack.c.h.b16 %v1031
    %v1078 = vunpack.c.l.b16 %v1032
    %v1079 = vunpack.c.h.b16 %v1032
    %v1080 = vunpack.c.l.b16 %v1033
    %v1081 = vunpack.c.h.b16 %v1033
    %v1082 = vunpack.c.l.b16 %v1034
    %v1083 = vunpack.c.h.b16 %v1034
    %v1084 = vunpack.c.l.b16 %v1035
    %v1085 = vunpack.c.h.b16 %v1035
    %v1086 = vunpack.c.l.b16 %v1036
    %v1087 = vunpack.c.h.b16 %v1036
    %v1088 = vunpack.c.l.b16 %v1037
    %v1089 = vunpack.c.h.b16 %v1037
    %v1090 = vunpack.c.l.b16 %v1038
    %v1091 = vunpack.c.h.b16 %v1038
    %v1092 = vunpack.c.l.b16 %v1039
    %v1093 = vunpack.c.h.b16 %v1039
    %v1094 = vunpack.c.l.b16 %v1040
    %v1095 = vunpack.c.h.b16 %v1040
    %v1096 = vunpack.c.l.b16 %v1041
    %v1097 = vunpack.c.h.b16 %v1041
    %v1098 = vpack.c.b16 %v1068, %v1066
    %v1099 = vpack.c.b16 %v1069, %v1067
    %v1100 = vpack.c.b16 %v1072, %v1070
    %v1101 = vpack.c.b16 %v1073, %v1071
    %v1102 = vpack.c.b16 %v1076, %v1074
    %v1103 = vpack.c.b16 %v1077, %v1075
    %v1104 = vpack.c.b16 %v1080, %v1078
    %v1105 = vpack.c.b16 %v1081, %v1079
    %v1106 = vpack.c.b16 %v1084, %v1082
    %v1107 = vpack.c.b16 %v1085, %v1083
    %v1108 = vpack.c.b16 %v1088, %v1086
    %v1109 = vpack.c.b16 %v1089, %v1087
    %v1110 = vpack.c.b16 %v1092, %v1090
    %v1111 = vpack.c.b16 %v1093, %v1091
    %v1112 = vpack.c.b16 %v1096, %v1094
    %v1113 = vpack.c.b16 %v1097, %v1095
    %1130 = vmatpush.bf16.msra.mxu0 %v1112
    %1131 = vmatpush.bf16.msra.mxu0 %v1110
    %1132 = vmatpush.bf16.msra.mxu0 %v1108
    %1133 = vmatpush.bf16.msra.mxu0 %v1106
    %1134 = vmatpush.bf16.msra.mxu0 %v1104
    %1135 = vmatpush.bf16.msra.mxu0 %v1102
    %1136 = vmatpush.bf16.msra.mxu0 %v1100
    %1137 = vmatpush.bf16.msra.mxu0 %v1098
    %1138 = vmatmul.bf16.gmra.mxu0 %v1044
    %v1139 = vpop.f32.mrf.mxu0
    %v1140 = vadd.f32 %v1046, %v1139
    %v1141 = vpop.f32.mrf.mxu0
    %1142 = vdwg.mxu0
    %1143 = vmatpush.bf16.msra.mxu0 %v1113
    %1144 = vmatpush.bf16.msra.mxu0 %v1111
    %1145 = vmatpush.bf16.msra.mxu0 %v1109
    %1146 = vmatpush.bf16.msra.mxu0 %v1107
    %1147 = vmatpush.bf16.msra.mxu0 %v1105
    %1148 = vmatpush.bf16.msra.mxu0 %v1103
    %1149 = vmatpush.bf16.msra.mxu0 %v1101
    %1150 = vmatpush.bf16.msra.mxu0 %v1099
    %1151 = vmatmul.bf16.gmra.mxu0 %v1044
    %v1152 = vpop.f32.mrf.mxu0
    %v1153 = vadd.f32 %v1047, %v1152
    %v1154 = vpop.f32.mrf.mxu0
    %1155 = vdwg.mxu0
    %v1156 = vxor.u32 %v1153, 2147483648
    %v1157 = vmul.f32 %v1156, 1.442695
    %v1158 = vpow.pop %v1157
    %v1159 = vadd.f32 %v1158, 1.0
    %v1160 = vrcp.pop %v1159
    %v1161 = vmul.f32 %v1159, %v1160
    %v1162 = vsub.f32 1.0, %v1161
    %v1163 = vmul.f32 %v1160, %v1162
    %v1164 = vadd.f32 %v1160, %v1163
    %vm1165 = vweird.f32 %v1159
    %vm1166 = vweird.f32 %v1160
    %vm1167 = vmor %vm1165, %vm1166
    %v1168 = vsel %vm1167, %v1160, %v1164
    %v1169 = vand.u32 2147483647, %v1159
    %vm1170 = vcmp.eq.f32.partialorder %v1169, 8.507059e+37
    %v1171 = vand.u32 %v1159, 2147483648
    %v1172 = vor.u32 1.1754944e-38, %v1171
    %v1173 = vsel %vm1170, %v1172, %v1168
    %v1174 = vmul.f32 1.0, %v1173
    %v1175 = vmul.f32 %v1140, %v1174
    %v1176 = vadd.f32 %v1024, %v1175
    %v1177 = vmul.f32 %v1176, 0.70710677
    %vm1178 = vcmp.gt.f32.partialorder %v1177, 0.0
    %v1179 = vmul.f32 %v1177, 0.25
    %v1180 = vsel %vm1178, %v1177, %v1179
    %v1181 = vpack.c.bf16 %v1180, %v1180
    %v1182 = vld [vmem:[%s6] sm:$0xf]
    %v1183 = vld [vmem:[%s6 + $0x4] sm:$0xf]
    %v1184 = vld [vmem:[%s6 + $0x8] sm:$0xf]
    %v1185 = vld [vmem:[%s6 + $0xc] sm:$0xf]
    %v1186 = vld [vmem:[%s6 + $0x10] sm:$0xf]
    %v1187 = vld [vmem:[%s6 + $0x14] sm:$0xf]
    %v1188 = vld [vmem:[%s6 + $0x18] sm:$0xf]
    %v1189 = vld [vmem:[%s6 + $0x1c] sm:$0xf]
    %v1190 = vld [vmem:[%s6 + $0x20] sm:$0xf]
    %v1191 = vld [vmem:[%s6 + $0x24] sm:$0xf]
    %v1192 = vld [vmem:[%s6 + $0x28] sm:$0xf]
    %v1193 = vld [vmem:[%s6 + $0x2c] sm:$0xf]
    %v1194 = vld [vmem:[%s6 + $0x30] sm:$0xf]
    %v1195 = vld [vmem:[%s6 + $0x34] sm:$0xf]
    %v1196 = vld [vmem:[%s6 + $0x38] sm:$0xf]
    %v1197 = vld [vmem:[%s6 + $0x3c] sm:$0xf]
    %v1198 = vmul.f32 %v800, %v100
    %v1215 = vunpack.c.l.b16 %v1182
    %v1216 = vunpack.c.l.b16 %v1183
    %v1217 = vunpack.c.l.b16 %v1184
    %v1218 = vunpack.c.l.b16 %v1185
    %v1219 = vunpack.c.l.b16 %v1186
    %v1220 = vunpack.c.l.b16 %v1187
    %v1221 = vunpack.c.l.b16 %v1188
    %v1222 = vunpack.c.l.b16 %v1189
    %v1223 = vunpack.c.l.b16 %v1190
    %v1224 = vunpack.c.l.b16 %v1191
    %v1225 = vunpack.c.l.b16 %v1192
    %v1226 = vunpack.c.l.b16 %v1193
    %v1227 = vunpack.c.l.b16 %v1194
    %v1228 = vunpack.c.l.b16 %v1195
    %v1229 = vunpack.c.l.b16 %v1196
    %v1230 = vunpack.c.l.b16 %v1197
    %v1231 = vpack.c.b16 %v1216, %v1215
    %v1232 = vpack.c.b16 %v1218, %v1217
    %v1233 = vpack.c.b16 %v1220, %v1219
    %v1234 = vpack.c.b16 %v1222, %v1221
    %v1235 = vpack.c.b16 %v1224, %v1223
    %v1236 = vpack.c.b16 %v1226, %v1225
    %v1237 = vpack.c.b16 %v1228, %v1227
    %v1238 = vpack.c.b16 %v1230, %v1229
    %1247 = vmatpush.bf16.msra.mxu0 %v1238
    %1248 = vmatpush.bf16.msra.mxu0 %v1237
    %1249 = vmatpush.bf16.msra.mxu0 %v1236
    %1250 = vmatpush.bf16.msra.mxu0 %v1235
    %1251 = vmatpush.bf16.msra.mxu0 %v1234
    %1252 = vmatpush.bf16.msra.mxu0 %v1233
    %1253 = vmatpush.bf16.msra.mxu0 %v1232
    %1254 = vmatpush.bf16.msra.mxu0 %v1231
    %1255 = vmatmul.bf16.gmra.mxu0 %v1181
    %v1256 = vpop.f32.mrf.mxu0
    %v1257 = vadd.f32 %v1198, %v1256
    %v1258 = vpop.f32.mrf.mxu0
    %1259 = vdwg.mxu0
    %1260 = vst [vmem:[%s7] sm:$0xff] %v1257
    // Predicated region
    $region46: #{tabnet_forward.1} parent=1 // pred_check
      _
    $region47: #{tabnet_forward.1} parent=1 // pred_check_branch
      %1262 = sbr.rel (0) target = $region49
    $region48: #{tabnet_forward.1} parent=1 // pred_region
      _
    $region49: #{tabnet_forward.1} parent=1 // pred_fallthru
      _
    // Predicated region
    $region50: #{tabnet_forward.1} parent=1 // pred_check
      _
    $region51: #{tabnet_forward.1} parent=1 // pred_check_branch
      %1264 = sbr.rel (0) target = $region53
    $region52: #{tabnet_forward.1} parent=1 // pred_region
      _
    $region53: #{tabnet_forward.1} parent=1 // pred_fallthru
      _
    %1265 = vsyncpa [#allocation3], 1
    %1266 = vsyncpa [#allocation5], 1
    %1267 = vsyncpa [#allocation8], 1

</llo_original>
